<compile_context>
chip_gen: v7x
topology: tpu7x:2x2x1
jax: 0.10.0
libtpu: 0.0.40
codegen_flags: <defaults>
</compile_context>

<pallas_src>
import jax
import jax.numpy as jnp
from jax.experimental import pallas as pl
from jax.experimental.pallas import tpu as pltpu

LATENT = 96       # latent_features['MinkUNet']
FEAT = 32         # args.feature_size
K_QUEUE = 128     # MoCo queue length K (small synthetic; real MoCo uses 65536)
M_MOM = 0.999     # momentum m
T_TEMP = 0.1      # temperature T
IN_CH = 3         # xyz input channels
IN_CH_PAD = 16    # pad 3 -> 16: one full bf16 sublane tile for the first MXU contraction


# ------------------------- fully fused MoCo kernel -------------------------
def _moco_fused_kernel(ptr_ref,                                   # SMEM (1,) int32
                       xq_ref, xk_ref,                            # (bn, IN_CH_PAD)
                       weq_ref, beq_ref, whq_ref, bhq_ref,        # query encoder+head
                       wek_ref, bek_ref, whk_ref, bhk_ref,        # key encoder+head (old)
                       queue_ref,                                 # (K, FEAT) old queue
                       logits_ref,                                # (bn, 1+K)
                       wek_o, bek_o, whk_o, bhk_o,                # new key params (aliased)
                       queue_o,                                   # new queue (aliased)
                       kbuf_ref):                                 # VMEM scratch (bn, FEAT)
    eps = 1e-12
    inv_t = 1.0 / T_TEMP
    bf16 = jnp.bfloat16
    pid = pl.program_id(0)
    bn = xq_ref.shape[0]
    kq = queue_o.shape[0]

    def encode(x, we, be, wh, bh):
        # TODO(synk): the Minkowski sparse-conv backbone has no Pallas
        # equivalent; dense per-point linear+ReLU stand-in of matching
        # channel dims.  bf16 MXU operands, f32 accumulation.
        h = jnp.dot(x.astype(bf16), we.astype(bf16),
                    preferred_element_type=jnp.float32) + be
        h = jnp.maximum(h, 0.0)
        z = jnp.dot(h.astype(bf16), wh.astype(bf16),
                    preferred_element_type=jnp.float32) + bh
        # nn.functional.normalize(z, dim=1): z / max(||z||, eps)  via EUP rsqrt
        ssq = jnp.sum(z * z, axis=-1, keepdims=True)
        return z * jax.lax.rsqrt(jnp.maximum(ssq, eps * eps))

    # ---- momentum update of the key encoder params (f32 elementwise).
    # Tiny; recomputed per block so every block encodes k with the NEW params,
    # but written back to HBM only once (pl.when below).
    wek = wek_ref[...] * M_MOM + weq_ref[...] * (1.0 - M_MOM)
    bek = bek_ref[...] * M_MOM + beq_ref[...] * (1.0 - M_MOM)
    whk = whk_ref[...] * M_MOM + whq_ref[...] * (1.0 - M_MOM)
    bhk = bhk_ref[...] * M_MOM + bhq_ref[...] * (1.0 - M_MOM)

    @pl.when(pid == 0)
    def _init():
        wek_o[...] = wek
        bek_o[...] = bek
        whk_o[...] = whk
        bhk_o[...] = bhk
        # Seed the aliased queue output with the old queue once; the enqueue
        # below overwrites only this forward's rows.
        queue_o[...] = queue_ref[...]

    # ---- query branch: q = normalize(head_q(model_q(pcd_q))) ----
    q = encode(xq_ref[...], weq_ref[...], beq_ref[...], whq_ref[...], bhq_ref[...])
    # ---- key branch (no_grad in torch): uses momentum-updated params ----
    k = encode(xk_ref[...], wek, bek, whk, bhk)

    # ---- contrastive logits; 1/T folded into q (exact: logits linear in q) ----
    qs = q * inv_t
    l_pos = jnp.sum(qs * k, axis=-1, keepdims=True)              # (bn, 1)  f32
    l_neg = jax.lax.dot_general(                                  # (bn, K) = qs @ queue.T
        qs.astype(bf16), queue_ref[...].astype(bf16),
        dimension_numbers=(((1,), (1,)), ((), ())),
        preferred_element_type=jnp.float32)
    # logits = cat([l_pos, l_neg], 1) fused in-kernel (single store per block)
    logits_ref[...] = jnp.concatenate([l_pos, l_neg], axis=-1)

    # ---- fused _dequeue_and_enqueue_pcd: write k rows at the queue pointer ----
    start = ptr_ref[0] + pid * bn

    @pl.when(start + bn <= kq)
    def _enqueue():
        queue_o[pl.ds(start, bn), :] = k

    @pl.when(start + bn > kq)
    def _enqueue_wrap():
        # rare wrap-around path: per-row modulo writes via a VMEM staging buffer
        kbuf_ref[...] = k

        def body(i, carry):
            row = jax.lax.rem(start + i, kq)
            queue_o[pl.ds(row, 1), :] = kbuf_ref[pl.ds(i, 1), :]
            return carry

        jax.lax.fori_loop(0, bn, body, 0)


# --------------------------------- wrapper ---------------------------------
def moco_forward(pcd_q, pcd_k, params_q, params_k, queue_t, queue_ptr, *, block_n=1024):
    """segments=None branch of MoCo.forward, fully fused in one pallas_call.

    pcd_q / pcd_k : (N, IN_CH_PAD) zero-padded per-point features.
    params_*      : (we (IN_CH_PAD, LATENT), be (1, LATENT), wh (LATENT, FEAT), bh (1, FEAT)).
    queue_t       : negative queue stored transposed, shape (K_QUEUE, FEAT).
    queue_ptr     : (1,) int32 queue pointer (traced — no retrace per value).
    """
    n = pcd_q.shape[0]
    bn = min(block_n, n)
    assert n % bn == 0 and bn % 8 == 0, "point count must tile into multiple-of-8 blocks"
    grid = (n // bn,)

    def full(shape):
        return pl.BlockSpec(shape, lambda i: (0,) * len(shape))

    x_spec = pl.BlockSpec((bn, IN_CH_PAD), lambda i: (i, 0))
    we_s, be_s = (IN_CH_PAD, LATENT), (1, LATENT)
    wh_s, bh_s = (LATENT, FEAT), (1, FEAT)
    q_s = (K_QUEUE, FEAT)

    out_shapes = (
        jax.ShapeDtypeStruct((n, 1 + K_QUEUE), jnp.float32),   # logits (concat fused)
        jax.ShapeDtypeStruct(we_s, jnp.float32),               # new key params ...
        jax.ShapeDtypeStruct(be_s, jnp.float32),
        jax.ShapeDtypeStruct(wh_s, jnp.float32),
        jax.ShapeDtypeStruct(bh_s, jnp.float32),
        jax.ShapeDtypeStruct(q_s, jnp.float32),                # new queue (enqueued in-kernel)
    )

    outs = pl.pallas_call(
        _moco_fused_kernel,
        grid=grid,
        in_specs=[
            pl.BlockSpec(memory_space=pltpu.MemorySpace.SMEM),   # queue_ptr
            x_spec, x_spec,                                      # pcd_q / pcd_k point blocks
            full(we_s), full(be_s), full(wh_s), full(bh_s),      # query params (VMEM-resident)
            full(we_s), full(be_s), full(wh_s), full(bh_s),      # key params   (VMEM-resident)
            full(q_s),                                           # queue        (VMEM-resident)
        ],
        out_specs=(
            pl.BlockSpec((bn, 1 + K_QUEUE), lambda i: (i, 0)),
            full(we_s), full(be_s), full(wh_s), full(bh_s),
            full(q_s),
        ),
        out_shape=out_shapes,
        scratch_shapes=[pltpu.VMEM((bn, FEAT), jnp.float32)],
        # key params + queue updated in place: no extra HBM buffers / copy ops.
        input_output_aliases={7: 1, 8: 2, 9: 3, 10: 4, 11: 5},
        # TODO(synk): raise vmem_limit_bytes and switch the enqueue to a
        # streamed pl.ANY destination for realistic K (65536); "arbitrary" is
        # required while the shared queue/param outputs are written in-kernel.
        compiler_params=pltpu.CompilerParams(
            dimension_semantics=("arbitrary",)),
    )(queue_ptr, pcd_q, pcd_k, *params_q, *params_k, queue_t)

    logits, nwe, nbe, nwh, nbh, new_queue = outs
    labels = jnp.zeros((n,), dtype=jnp.int32)
    new_ptr = (queue_ptr + n) % K_QUEUE
    return logits, labels, (nwe, nbe, nwh, nbh), new_queue, new_ptr


if __name__ == "__main__":
    key = jax.random.PRNGKey(0)
    k1, k2, k3, k4, k5, k6, k7, k8 = jax.random.split(key, 8)

    N = 16          # number of points
    BLOCK_N = 8     # 2-step point grid: exercises pl.when init + per-block enqueue

    # per-point xyz features, zero-padded 3 -> IN_CH_PAD
    pcd_q3 = jax.random.normal(k1, (N, IN_CH), dtype=jnp.float32)
    pcd_k3 = jax.random.normal(k2, (N, IN_CH), dtype=jnp.float32)
    pcd_q = jnp.pad(pcd_q3, ((0, 0), (0, IN_CH_PAD - IN_CH)))
    pcd_k = jnp.pad(pcd_k3, ((0, 0), (0, IN_CH_PAD - IN_CH)))

    # query encoder + head params; padded input-channel rows are zero so the
    # padded channels contribute nothing.
    we_q = jnp.pad(jax.random.normal(k3, (IN_CH, LATENT), dtype=jnp.float32) * 0.1,
                   ((0, IN_CH_PAD - IN_CH), (0, 0)))
    be_q = jax.random.normal(k4, (1, LATENT), dtype=jnp.float32) * 0.01
    wh_q = jax.random.normal(k5, (LATENT, FEAT), dtype=jnp.float32) * 0.1
    bh_q = jax.random.normal(k6, (1, FEAT), dtype=jnp.float32) * 0.01
    params_q = (we_q, be_q, wh_q, bh_q)

    # key encoder: perturbed copy (module __init__ copies q->k; the perturbation
    # just makes the momentum-update check non-degenerate). Padded rows kept 0.
    perturb = [jax.random.normal(kk, p.shape, dtype=jnp.float32) * 0.01
               for kk, p in zip(jax.random.split(k7, 4), params_q)]
    params_k = tuple(p + d for p, d in zip(params_q, perturb))
    params_k = (params_k[0].at[IN_CH:].set(0.0),) + params_k[1:]

    # negative queue: randn(FEAT, K) normalized along dim 0; stored transposed (K, FEAT)
    queue_ck = jax.random.normal(k8, (FEAT, K_QUEUE), dtype=jnp.float32)
    queue_ck = queue_ck / jnp.maximum(jnp.linalg.norm(queue_ck, axis=0, keepdims=True), 1e-12)
    queue_t = queue_ck.T
    queue_ptr = jnp.array([40], dtype=jnp.int32)   # dynamic pointer; no wrap for this batch
    ptr0 = 40

    # --------------------------- references ---------------------------
    def ref_encode(x, we, be, wh, bh, mm_dtype):
        h = jnp.dot(x.astype(mm_dtype), we.astype(mm_dtype),
                    preferred_element_type=jnp.float32) + be
        h = jnp.maximum(h, 0.0)
        z = jnp.dot(h.astype(mm_dtype), wh.astype(mm_dtype),
                    preferred_element_type=jnp.float32) + bh
        ssq = jnp.sum(z * z, axis=-1, keepdims=True)
        return z * jax.lax.rsqrt(jnp.maximum(ssq, 1e-24))

    ref_pk = tuple(pk * M_MOM + pq * (1.0 - M_MOM) for pk, pq in zip(params_k, params_q))

    def ref_forward(mm_dtype):
        q = ref_encode(pcd_q, *params_q, mm_dtype)
        k = ref_encode(pcd_k, *ref_pk, mm_dtype)
        qs = q * (1.0 / T_TEMP)
        l_pos = jnp.sum(qs * k, axis=1, keepdims=True)
        l_neg = jnp.dot(qs.astype(mm_dtype), queue_t.T.astype(mm_dtype),
                        preferred_element_type=jnp.float32)
        logits = jnp.concatenate([l_pos, l_neg], axis=1)
        new_queue = queue_t.at[ptr0:ptr0 + N].set(k)
        return logits, new_queue

    logits_ref_t, queue_ref_t = ref_forward(jnp.bfloat16)   # matches kernel math (tight)
    logits_ref_f, _ = ref_forward(jnp.float32)               # torch f32 semantics (loose)

    # ------------------------------ run -------------------------------
    moco_fwd = jax.jit(moco_forward, static_argnames=("block_n",))
    logits, labels, new_params_k, new_queue, new_ptr = moco_fwd(
        pcd_q, pcd_k, params_q, params_k, queue_t, queue_ptr, block_n=BLOCK_N)
    jax.block_until_ready((logits, labels, new_queue, new_ptr) + tuple(new_params_k))

    # ----------------------------- checks -----------------------------
    assert logits.shape == (N, 1 + K_QUEUE)
    assert labels.shape == (N,) and labels.dtype == jnp.int32 and bool(jnp.all(labels == 0))
    # tight: same bf16-MXU/f32-accumulate algorithm expressed in plain XLA
    assert jnp.allclose(logits, logits_ref_t, atol=1e-2, rtol=1e-2), \
        float(jnp.max(jnp.abs(logits - logits_ref_t)))
    assert jnp.allclose(new_queue, queue_ref_t, atol=1e-2, rtol=1e-2), \
        float(jnp.max(jnp.abs(new_queue - queue_ref_t)))
    # loose: fidelity to the f32 torch module (bf16 MXU operands => ~1e-2 level)
    assert jnp.allclose(logits, logits_ref_f, atol=0.25, rtol=0.1), \
        float(jnp.max(jnp.abs(logits - logits_ref_f)))
    # momentum update is pure f32 elementwise -> exact
    assert all(jnp.allclose(a, b, atol=1e-6) for a, b in zip(new_params_k, ref_pk))
    assert int(new_ptr[0]) == (ptr0 + N) % K_QUEUE
    print("KERNEL_OK")
</pallas_src>

<mosaic_0001>
module attributes {stable_mosaic.version = 11 : i64} {
  func.func @_moco_fused_kernel(%arg0: i32, %arg1: memref<1xi32, #tpu.memory_space<smem>>, %arg2: memref<8x16xf32, #tpu.memory_space<vmem>>, %arg3: memref<8x16xf32, #tpu.memory_space<vmem>>, %arg4: memref<16x96xf32, #tpu.memory_space<vmem>>, %arg5: memref<1x96xf32, #tpu.memory_space<vmem>>, %arg6: memref<96x32xf32, #tpu.memory_space<vmem>>, %arg7: memref<1x32xf32, #tpu.memory_space<vmem>>, %arg8: memref<16x96xf32, #tpu.memory_space<vmem>>, %arg9: memref<1x96xf32, #tpu.memory_space<vmem>>, %arg10: memref<96x32xf32, #tpu.memory_space<vmem>>, %arg11: memref<1x32xf32, #tpu.memory_space<vmem>>, %arg12: memref<128x32xf32, #tpu.memory_space<vmem>>, %arg13: memref<8x129xf32, #tpu.memory_space<vmem>>, %arg14: memref<16x96xf32, #tpu.memory_space<vmem>>, %arg15: memref<1x96xf32, #tpu.memory_space<vmem>>, %arg16: memref<96x32xf32, #tpu.memory_space<vmem>>, %arg17: memref<1x32xf32, #tpu.memory_space<vmem>>, %arg18: memref<128x32xf32, #tpu.memory_space<vmem>>, %arg19: memref<8x32xf32, #tpu.memory_space<vmem>>) attributes {dimension_semantics = [#tpu.dimension_semantics<arbitrary>], iteration_bounds = array<i64: 2>, scalar_prefetch = 0 : i64, scratch_operands = 1 : i64, tpu.core_type = #tpu.core_type<tc>, window_params = [{transform_indices = @transform_0, window_bounds = array<i64: 1>}, {transform_indices = @transform_1, window_bounds = array<i64: 8, 16>}, {transform_indices = @transform_2, window_bounds = array<i64: 8, 16>}, {pipeline_mode = #tpu.pipeline_mode<synchronous>, transform_indices = @transform_3, window_bounds = array<i64: 16, 96>}, {pipeline_mode = #tpu.pipeline_mode<synchronous>, transform_indices = @transform_4, window_bounds = array<i64: 1, 96>}, {pipeline_mode = #tpu.pipeline_mode<synchronous>, transform_indices = @transform_5, window_bounds = array<i64: 96, 32>}, {pipeline_mode = #tpu.pipeline_mode<synchronous>, transform_indices = @transform_6, window_bounds = array<i64: 1, 32>}, {pipeline_mode = #tpu.pipeline_mode<synchronous>, transform_indices = @transform_7, window_bounds = array<i64: 16, 96>}, {pipeline_mode = #tpu.pipeline_mode<synchronous>, transform_indices = @transform_8, window_bounds = array<i64: 1, 96>}, {pipeline_mode = #tpu.pipeline_mode<synchronous>, transform_indices = @transform_9, window_bounds = array<i64: 96, 32>}, {pipeline_mode = #tpu.pipeline_mode<synchronous>, transform_indices = @transform_10, window_bounds = array<i64: 1, 32>}, {pipeline_mode = #tpu.pipeline_mode<synchronous>, transform_indices = @transform_11, window_bounds = array<i64: 128, 32>}, {transform_indices = @transform_12, window_bounds = array<i64: 8, 129>}, {pipeline_mode = #tpu.pipeline_mode<synchronous>, transform_indices = @transform_13, window_bounds = array<i64: 16, 96>}, {pipeline_mode = #tpu.pipeline_mode<synchronous>, transform_indices = @transform_14, window_bounds = array<i64: 1, 96>}, {pipeline_mode = #tpu.pipeline_mode<synchronous>, transform_indices = @transform_15, window_bounds = array<i64: 96, 32>}, {pipeline_mode = #tpu.pipeline_mode<synchronous>, transform_indices = @transform_16, window_bounds = array<i64: 1, 32>}, {pipeline_mode = #tpu.pipeline_mode<synchronous>, transform_indices = @transform_17, window_bounds = array<i64: 128, 32>}]} {
    %c0 = arith.constant 0 : index
    %c0_0 = arith.constant 0 : index
    %0 = vector.load %arg8[%c0, %c0_0] : memref<16x96xf32, #tpu.memory_space<vmem>>, vector<16x96xf32>
    %cst = arith.constant 9.990000e-01 : f32
    %1 = vector.broadcast %cst : f32 to vector<16x96xf32>
    %2 = arith.mulf %0, %1 : vector<16x96xf32>
    %c0_1 = arith.constant 0 : index
    %c0_2 = arith.constant 0 : index
    %3 = vector.load %arg4[%c0_1, %c0_2] : memref<16x96xf32, #tpu.memory_space<vmem>>, vector<16x96xf32>
    %cst_3 = arith.constant 1.000000e-03 : f32
    %4 = vector.broadcast %cst_3 : f32 to vector<16x96xf32>
    %5 = arith.mulf %3, %4 : vector<16x96xf32>
    %6 = arith.addf %2, %5 : vector<16x96xf32>
    %c0_4 = arith.constant 0 : index
    %c0_5 = arith.constant 0 : index
    %7 = vector.load %arg9[%c0_4, %c0_5] : memref<1x96xf32, #tpu.memory_space<vmem>>, vector<1x96xf32>
    %cst_6 = arith.constant 9.990000e-01 : f32
    %8 = vector.broadcast %cst_6 : f32 to vector<1x96xf32>
    %9 = arith.mulf %7, %8 : vector<1x96xf32>
    %c0_7 = arith.constant 0 : index
    %c0_8 = arith.constant 0 : index
    %10 = vector.load %arg5[%c0_7, %c0_8] : memref<1x96xf32, #tpu.memory_space<vmem>>, vector<1x96xf32>
    %cst_9 = arith.constant 1.000000e-03 : f32
    %11 = vector.broadcast %cst_9 : f32 to vector<1x96xf32>
    %12 = arith.mulf %10, %11 : vector<1x96xf32>
    %13 = arith.addf %9, %12 : vector<1x96xf32>
    %c0_10 = arith.constant 0 : index
    %c0_11 = arith.constant 0 : index
    %14 = vector.load %arg10[%c0_10, %c0_11] : memref<96x32xf32, #tpu.memory_space<vmem>>, vector<96x32xf32>
    %cst_12 = arith.constant 9.990000e-01 : f32
    %15 = vector.broadcast %cst_12 : f32 to vector<96x32xf32>
    %16 = arith.mulf %14, %15 : vector<96x32xf32>
    %c0_13 = arith.constant 0 : index
    %c0_14 = arith.constant 0 : index
    %17 = vector.load %arg6[%c0_13, %c0_14] : memref<96x32xf32, #tpu.memory_space<vmem>>, vector<96x32xf32>
    %cst_15 = arith.constant 1.000000e-03 : f32
    %18 = vector.broadcast %cst_15 : f32 to vector<96x32xf32>
    %19 = arith.mulf %17, %18 : vector<96x32xf32>
    %20 = arith.addf %16, %19 : vector<96x32xf32>
    %c0_16 = arith.constant 0 : index
    %c0_17 = arith.constant 0 : index
    %21 = vector.load %arg11[%c0_16, %c0_17] : memref<1x32xf32, #tpu.memory_space<vmem>>, vector<1x32xf32>
    %cst_18 = arith.constant 9.990000e-01 : f32
    %22 = vector.broadcast %cst_18 : f32 to vector<1x32xf32>
    %23 = arith.mulf %21, %22 : vector<1x32xf32>
    %c0_19 = arith.constant 0 : index
    %c0_20 = arith.constant 0 : index
    %24 = vector.load %arg7[%c0_19, %c0_20] : memref<1x32xf32, #tpu.memory_space<vmem>>, vector<1x32xf32>
    %cst_21 = arith.constant 1.000000e-03 : f32
    %25 = vector.broadcast %cst_21 : f32 to vector<1x32xf32>
    %26 = arith.mulf %24, %25 : vector<1x32xf32>
    %27 = arith.addf %23, %26 : vector<1x32xf32>
    %c0_i32 = arith.constant 0 : i32
    %28 = arith.cmpi eq, %arg0, %c0_i32 : i32
    %29 = arith.extui %28 : i1 to i32
    %c0_i32_22 = arith.constant 0 : i32
    %30 = arith.cmpi ne, %29, %c0_i32_22 : i32
    scf.if %30 {
      %c0_58 = arith.constant 0 : index
      %c0_59 = arith.constant 0 : index
      %99 = vector.load %arg14[%c0_58, %c0_59] : memref<16x96xf32, #tpu.memory_space<vmem>>, vector<16x96xf32>
      tpu.vector_store %arg14[%c0_58, %c0_59], %6 {strides = array<i32>} : memref<16x96xf32, #tpu.memory_space<vmem>>, vector<16x96xf32>,
      %c0_60 = arith.constant 0 : index
      %c0_61 = arith.constant 0 : index
      %100 = vector.load %arg15[%c0_60, %c0_61] : memref<1x96xf32, #tpu.memory_space<vmem>>, vector<1x96xf32>
      tpu.vector_store %arg15[%c0_60, %c0_61], %13 {strides = array<i32>} : memref<1x96xf32, #tpu.memory_space<vmem>>, vector<1x96xf32>,
      %c0_62 = arith.constant 0 : index
      %c0_63 = arith.constant 0 : index
      %101 = vector.load %arg16[%c0_62, %c0_63] : memref<96x32xf32, #tpu.memory_space<vmem>>, vector<96x32xf32>
      tpu.vector_store %arg16[%c0_62, %c0_63], %20 {strides = array<i32>} : memref<96x32xf32, #tpu.memory_space<vmem>>, vector<96x32xf32>,
      %c0_64 = arith.constant 0 : index
      %c0_65 = arith.constant 0 : index
      %102 = vector.load %arg17[%c0_64, %c0_65] : memref<1x32xf32, #tpu.memory_space<vmem>>, vector<1x32xf32>
      tpu.vector_store %arg17[%c0_64, %c0_65], %27 {strides = array<i32>} : memref<1x32xf32, #tpu.memory_space<vmem>>, vector<1x32xf32>,
      %c0_66 = arith.constant 0 : index
      %c0_67 = arith.constant 0 : index
      %103 = vector.load %arg12[%c0_66, %c0_67] : memref<128x32xf32, #tpu.memory_space<vmem>>, vector<128x32xf32>
      %c0_68 = arith.constant 0 : index
      %c0_69 = arith.constant 0 : index
      %104 = vector.load %arg18[%c0_68, %c0_69] : memref<128x32xf32, #tpu.memory_space<vmem>>, vector<128x32xf32>
      tpu.vector_store %arg18[%c0_68, %c0_69], %103 {strides = array<i32>} : memref<128x32xf32, #tpu.memory_space<vmem>>, vector<128x32xf32>,
    } else {
    }
    %c0_23 = arith.constant 0 : index
    %c0_24 = arith.constant 0 : index
    %31 = vector.load %arg2[%c0_23, %c0_24] : memref<8x16xf32, #tpu.memory_space<vmem>>, vector<8x16xf32>
    %c0_25 = arith.constant 0 : index
    %c0_26 = arith.constant 0 : index
    %32 = vector.load %arg4[%c0_25, %c0_26] : memref<16x96xf32, #tpu.memory_space<vmem>>, vector<16x96xf32>
    %c0_27 = arith.constant 0 : index
    %c0_28 = arith.constant 0 : index
    %33 = vector.load %arg5[%c0_27, %c0_28] : memref<1x96xf32, #tpu.memory_space<vmem>>, vector<1x96xf32>
    %c0_29 = arith.constant 0 : index
    %c0_30 = arith.constant 0 : index
    %34 = vector.load %arg6[%c0_29, %c0_30] : memref<96x32xf32, #tpu.memory_space<vmem>>, vector<96x32xf32>
    %c0_31 = arith.constant 0 : index
    %c0_32 = arith.constant 0 : index
    %35 = vector.load %arg7[%c0_31, %c0_32] : memref<1x32xf32, #tpu.memory_space<vmem>>, vector<1x32xf32>
    %36 = arith.truncf %31 : vector<8x16xf32> to vector<8x16xbf16>
    %37 = arith.truncf %32 : vector<16x96xf32> to vector<16x96xbf16>
    %cst_33 = arith.constant dense<0.000000e+00> : vector<8x96xf32>
    %38 = tpu.matmul %36, %37, %cst_33 {dimension_numbers = #tpu.dot_dimension_numbers<[1], [0], [0], [1], [0, 0, 1, 1], [], []>} : vector<8x16xbf16>, vector<16x96xbf16>, vector<8x96xf32> -> vector<8x96xf32>
    %39 = vector.broadcast %33 : vector<1x96xf32> to vector<8x96xf32>
    %40 = arith.addf %38, %39 : vector<8x96xf32>
    %cst_34 = arith.constant 0.000000e+00 : f32
    %41 = vector.broadcast %cst_34 : f32 to vector<8x96xf32>
    %42 = arith.maximumf %40, %41 : vector<8x96xf32>
    %43 = arith.truncf %42 : vector<8x96xf32> to vector<8x96xbf16>
    %44 = arith.truncf %34 : vector<96x32xf32> to vector<96x32xbf16>
    %cst_35 = arith.constant dense<0.000000e+00> : vector<8x32xf32>
    %45 = tpu.matmul %43, %44, %cst_35 {dimension_numbers = #tpu.dot_dimension_numbers<[1], [0], [0], [1], [0, 0, 1, 1], [], []>} : vector<8x96xbf16>, vector<96x32xbf16>, vector<8x32xf32> -> vector<8x32xf32>
    %46 = vector.broadcast %35 : vector<1x32xf32> to vector<8x32xf32>
    %47 = arith.addf %45, %46 : vector<8x32xf32>
    %48 = arith.mulf %47, %47 : vector<8x32xf32>
    %cst_36 = arith.constant dense<0.000000e+00> : vector<8xf32>
    %49 = vector.multi_reduction <add>, %48, %cst_36 [1] : vector<8x32xf32> to vector<8xf32>
    %50 = vector.shape_cast %49 : vector<8xf32> to vector<8x1xf32>
    %cst_37 = arith.constant 1.000000e-24 : f32
    %51 = vector.broadcast %cst_37 : f32 to vector<8x1xf32>
    %52 = arith.maximumf %50, %51 : vector<8x1xf32>
    %53 = math.rsqrt %52 : vector<8x1xf32>
    %54 = vector.broadcast %53 : vector<8x1xf32> to vector<8x32xf32>
    %55 = arith.mulf %47, %54 : vector<8x32xf32>
    %c0_38 = arith.constant 0 : index
    %c0_39 = arith.constant 0 : index
    %56 = vector.load %arg3[%c0_38, %c0_39] : memref<8x16xf32, #tpu.memory_space<vmem>>, vector<8x16xf32>
    %57 = arith.truncf %56 : vector<8x16xf32> to vector<8x16xbf16>
    %58 = arith.truncf %6 : vector<16x96xf32> to vector<16x96xbf16>
    %cst_40 = arith.constant dense<0.000000e+00> : vector<8x96xf32>
    %59 = tpu.matmul %57, %58, %cst_40 {dimension_numbers = #tpu.dot_dimension_numbers<[1], [0], [0], [1], [0, 0, 1, 1], [], []>} : vector<8x16xbf16>, vector<16x96xbf16>, vector<8x96xf32> -> vector<8x96xf32>
    %60 = vector.broadcast %13 : vector<1x96xf32> to vector<8x96xf32>
    %61 = arith.addf %59, %60 : vector<8x96xf32>
    %cst_41 = arith.constant 0.000000e+00 : f32
    %62 = vector.broadcast %cst_41 : f32 to vector<8x96xf32>
    %63 = arith.maximumf %61, %62 : vector<8x96xf32>
    %64 = arith.truncf %63 : vector<8x96xf32> to vector<8x96xbf16>
    %65 = arith.truncf %20 : vector<96x32xf32> to vector<96x32xbf16>
    %cst_42 = arith.constant dense<0.000000e+00> : vector<8x32xf32>
    %66 = tpu.matmul %64, %65, %cst_42 {dimension_numbers = #tpu.dot_dimension_numbers<[1], [0], [0], [1], [0, 0, 1, 1], [], []>} : vector<8x96xbf16>, vector<96x32xbf16>, vector<8x32xf32> -> vector<8x32xf32>
    %67 = vector.broadcast %27 : vector<1x32xf32> to vector<8x32xf32>
    %68 = arith.addf %66, %67 : vector<8x32xf32>
    %69 = arith.mulf %68, %68 : vector<8x32xf32>
    %cst_43 = arith.constant dense<0.000000e+00> : vector<8xf32>
    %70 = vector.multi_reduction <add>, %69, %cst_43 [1] : vector<8x32xf32> to vector<8xf32>
    %71 = vector.shape_cast %70 : vector<8xf32> to vector<8x1xf32>
    %cst_44 = arith.constant 1.000000e-24 : f32
    %72 = vector.broadcast %cst_44 : f32 to vector<8x1xf32>
    %73 = arith.maximumf %71, %72 : vector<8x1xf32>
    %74 = math.rsqrt %73 : vector<8x1xf32>
    %75 = vector.broadcast %74 : vector<8x1xf32> to vector<8x32xf32>
    %76 = arith.mulf %68, %75 : vector<8x32xf32>
    %cst_45 = arith.constant 1.000000e+01 : f32
    %77 = vector.broadcast %cst_45 : f32 to vector<8x32xf32>
    %78 = arith.mulf %55, %77 : vector<8x32xf32>
    %79 = arith.mulf %78, %76 : vector<8x32xf32>
    %cst_46 = arith.constant dense<0.000000e+00> : vector<8xf32>
    %80 = vector.multi_reduction <add>, %79, %cst_46 [1] : vector<8x32xf32> to vector<8xf32>
    %81 = vector.shape_cast %80 : vector<8xf32> to vector<8x1xf32>
    %82 = arith.truncf %78 : vector<8x32xf32> to vector<8x32xbf16>
    %c0_47 = arith.constant 0 : index
    %c0_48 = arith.constant 0 : index
    %83 = vector.load %arg12[%c0_47, %c0_48] : memref<128x32xf32, #tpu.memory_space<vmem>>, vector<128x32xf32>
    %84 = arith.truncf %83 : vector<128x32xf32> to vector<128x32xbf16>
    %cst_49 = arith.constant dense<0.000000e+00> : vector<8x128xf32>
    %85 = tpu.matmul %82, %84, %cst_49 {dimension_numbers = #tpu.dot_dimension_numbers<[1], [1], [0], [0], [0, 0, 1, 0], [], []>} : vector<8x32xbf16>, vector<128x32xbf16>, vector<8x128xf32> -> vector<8x128xf32>
    %86 = tpu.concatenate %81, %85 in 1 : vector<8x1xf32>, vector<8x128xf32> -> vector<8x129xf32>
    %c0_50 = arith.constant 0 : index
    %c0_51 = arith.constant 0 : index
    %87 = vector.load %arg13[%c0_50, %c0_51] : memref<8x129xf32, #tpu.memory_space<vmem>>, vector<8x129xf32>
    tpu.vector_store %arg13[%c0_50, %c0_51], %86 {strides = array<i32>} : memref<8x129xf32, #tpu.memory_space<vmem>>, vector<8x129xf32>,
    %c0_52 = arith.constant 0 : index
    %88 = memref.load %arg1[%c0_52] : memref<1xi32, #tpu.memory_space<smem>>
    %c8_i32 = arith.constant 8 : i32
    %89 = arith.muli %arg0, %c8_i32 : i32
    %90 = arith.addi %88, %89 : i32
    %c8_i32_53 = arith.constant 8 : i32
    %91 = arith.addi %90, %c8_i32_53 : i32
    %c128_i32 = arith.constant 128 : i32
    %92 = arith.cmpi sle, %91, %c128_i32 : i32
    %93 = arith.extui %92 : i1 to i32
    %c0_i32_54 = arith.constant 0 : i32
    %94 = arith.cmpi ne, %93, %c0_i32_54 : i32
    scf.if %94 {
      %99 = arith.index_cast %90 : i32 to index
      %c0_58 = arith.constant 0 : index
      %100 = vector.load %arg18[%99, %c0_58] : memref<128x32xf32, #tpu.memory_space<vmem>>, vector<8x32xf32>
      tpu.vector_store %arg18[%99, %c0_58], %76 {strides = array<i32>} : memref<128x32xf32, #tpu.memory_space<vmem>>, vector<8x32xf32>,
    } else {
    }
    %c8_i32_55 = arith.constant 8 : i32
    %95 = arith.addi %90, %c8_i32_55 : i32
    %c128_i32_56 = arith.constant 128 : i32
    %96 = arith.cmpi sgt, %95, %c128_i32_56 : i32
    %97 = arith.extui %96 : i1 to i32
    %c0_i32_57 = arith.constant 0 : i32
    %98 = arith.cmpi ne, %97, %c0_i32_57 : i32
    scf.if %98 {
      %c0_58 = arith.constant 0 : index
      %c0_59 = arith.constant 0 : index
      %99 = vector.load %arg19[%c0_58, %c0_59] : memref<8x32xf32, #tpu.memory_space<vmem>>, vector<8x32xf32>
      tpu.vector_store %arg19[%c0_58, %c0_59], %76 {strides = array<i32>} : memref<8x32xf32, #tpu.memory_space<vmem>>, vector<8x32xf32>,
      %c0_i32_60 = arith.constant 0 : i32
      %c8_i32_61 = arith.constant 8 : i32
      %100 = arith.addi %c0_i32_60, %c8_i32_61 : i32
      %c1_i32 = arith.constant 1 : i32
      scf.for %arg20 = %c0_i32_60 to %100 step %c1_i32  : i32 {
        %101 = arith.addi %90, %arg20 : i32
        %c128_i32_63 = arith.constant 128 : i32
        %102 = arith.remsi %101, %c128_i32_63 : i32
        %103 = arith.index_cast %arg20 : i32 to index
        %c0_64 = arith.constant 0 : index
        %104 = vector.load %arg19[%103, %c0_64] : memref<8x32xf32, #tpu.memory_space<vmem>>, vector<1x32xf32>
        %105 = arith.index_cast %102 : i32 to index
        %c0_65 = arith.constant 0 : index
        %106 = vector.load %arg18[%105, %c0_65] : memref<128x32xf32, #tpu.memory_space<vmem>>, vector<1x32xf32>
        tpu.vector_store %arg18[%105, %c0_65], %104 {strides = array<i32>} : memref<128x32xf32, #tpu.memory_space<vmem>>, vector<1x32xf32>,
      }
      %c8_i32_62 = arith.constant 8 : i32
    } else {
    }
    return
  }
  func.func @transform_0(%arg0: i32) -> i32 {
    %c0_i32 = arith.constant 0 : i32
    %c0_i32_0 = arith.constant 0 : i32
    return %c0_i32 : i32
  }
  func.func @transform_1(%arg0: i32) -> (i32, i32) {
    %c0_i32 = arith.constant 0 : i32
    %c0_i32_0 = arith.constant 0 : i32
    return %arg0, %c0_i32 : i32, i32
  }
  func.func @transform_2(%arg0: i32) -> (i32, i32) {
    %c0_i32 = arith.constant 0 : i32
    %c0_i32_0 = arith.constant 0 : i32
    return %arg0, %c0_i32 : i32, i32
  }
  func.func @transform_3(%arg0: i32) -> (i32, i32) {
    %c0_i32 = arith.constant 0 : i32
    %c0_i32_0 = arith.constant 0 : i32
    %c0_i32_1 = arith.constant 0 : i32
    return %c0_i32, %c0_i32_0 : i32, i32
  }
  func.func @transform_4(%arg0: i32) -> (i32, i32) {
    %c0_i32 = arith.constant 0 : i32
    %c0_i32_0 = arith.constant 0 : i32
    %c0_i32_1 = arith.constant 0 : i32
    return %c0_i32, %c0_i32_0 : i32, i32
  }
  func.func @transform_5(%arg0: i32) -> (i32, i32) {
    %c0_i32 = arith.constant 0 : i32
    %c0_i32_0 = arith.constant 0 : i32
    %c0_i32_1 = arith.constant 0 : i32
    return %c0_i32, %c0_i32_0 : i32, i32
  }
  func.func @transform_6(%arg0: i32) -> (i32, i32) {
    %c0_i32 = arith.constant 0 : i32
    %c0_i32_0 = arith.constant 0 : i32
    %c0_i32_1 = arith.constant 0 : i32
    return %c0_i32, %c0_i32_0 : i32, i32
  }
  func.func @transform_7(%arg0: i32) -> (i32, i32) {
    %c0_i32 = arith.constant 0 : i32
    %c0_i32_0 = arith.constant 0 : i32
    %c0_i32_1 = arith.constant 0 : i32
    return %c0_i32, %c0_i32_0 : i32, i32
  }
  func.func @transform_8(%arg0: i32) -> (i32, i32) {
    %c0_i32 = arith.constant 0 : i32
    %c0_i32_0 = arith.constant 0 : i32
    %c0_i32_1 = arith.constant 0 : i32
    return %c0_i32, %c0_i32_0 : i32, i32
  }
  func.func @transform_9(%arg0: i32) -> (i32, i32) {
    %c0_i32 = arith.constant 0 : i32
    %c0_i32_0 = arith.constant 0 : i32
    %c0_i32_1 = arith.constant 0 : i32
    return %c0_i32, %c0_i32_0 : i32, i32
  }
  func.func @transform_10(%arg0: i32) -> (i32, i32) {
    %c0_i32 = arith.constant 0 : i32
    %c0_i32_0 = arith.constant 0 : i32
    %c0_i32_1 = arith.constant 0 : i32
    return %c0_i32, %c0_i32_0 : i32, i32
  }
  func.func @transform_11(%arg0: i32) -> (i32, i32) {
    %c0_i32 = arith.constant 0 : i32
    %c0_i32_0 = arith.constant 0 : i32
    %c0_i32_1 = arith.constant 0 : i32
    return %c0_i32, %c0_i32_0 : i32, i32
  }
  func.func @transform_12(%arg0: i32) -> (i32, i32) {
    %c0_i32 = arith.constant 0 : i32
    %c0_i32_0 = arith.constant 0 : i32
    return %arg0, %c0_i32 : i32, i32
  }
  func.func @transform_13(%arg0: i32) -> (i32, i32) {
    %c0_i32 = arith.constant 0 : i32
    %c0_i32_0 = arith.constant 0 : i32
    %c0_i32_1 = arith.constant 0 : i32
    return %c0_i32, %c0_i32_0 : i32, i32
  }
  func.func @transform_14(%arg0: i32) -> (i32, i32) {
    %c0_i32 = arith.constant 0 : i32
    %c0_i32_0 = arith.constant 0 : i32
    %c0_i32_1 = arith.constant 0 : i32
    return %c0_i32, %c0_i32_0 : i32, i32
  }
  func.func @transform_15(%arg0: i32) -> (i32, i32) {
    %c0_i32 = arith.constant 0 : i32
    %c0_i32_0 = arith.constant 0 : i32
    %c0_i32_1 = arith.constant 0 : i32
    return %c0_i32, %c0_i32_0 : i32, i32
  }
  func.func @transform_16(%arg0: i32) -> (i32, i32) {
    %c0_i32 = arith.constant 0 : i32
    %c0_i32_0 = arith.constant 0 : i32
    %c0_i32_1 = arith.constant 0 : i32
    return %c0_i32, %c0_i32_0 : i32, i32
  }
  func.func @transform_17(%arg0: i32) -> (i32, i32) {
    %c0_i32 = arith.constant 0 : i32
    %c0_i32_0 = arith.constant 0 : i32
    %c0_i32_1 = arith.constant 0 : i32
    return %c0_i32, %c0_i32_0 : i32, i32
  }
}

</mosaic_0001>

<llo_original>
// kernel: moco_forward.1
$region0: #{moco_forward.1}
  #allocation0 [shape = 'u32[]', space=smem, size = 0x4, offset = 0x4, fixed_abs, tag = 'smem constant byte address 0x4 - core index']
  #allocation1 [shape = 'u32[144,128]{1,0:T(1,128)}', space=vmem, size = 0x12000, scoped, tag = 'internal scratch']
  #allocation2 [shape = 'f32[8,32]{1,0:T(8,128)}', space=vmem, size = 0x1000, scoped, tag = 'scratch operand']
  #allocation3 [shape = 's32[1]{0:T(128)S(6)}', space=smem, size = 0x200, scoped, tag = 'scoped memory for moco_forward.1']
  %s0 = inlined_call_operand.<no memory space> [shape: s32[1], index: 0, kind: input, shape index: {}]
  %s1 = inlined_call_operand.vmem [shape: f32[16,16], index: 1, kind: input, shape index: {}]
  %s2 = inlined_call_operand.vmem [shape: f32[16,16], index: 2, kind: input, shape index: {}]
  %s3 = inlined_call_operand.vmem [shape: f32[16,96], index: 3, kind: input, shape index: {}]
  %s4 = inlined_call_operand.vmem [shape: f32[1,96], index: 4, kind: input, shape index: {}]
  %s5 = inlined_call_operand.vmem [shape: f32[96,32], index: 5, kind: input, shape index: {}]
  %s6 = inlined_call_operand.vmem [shape: f32[1,32], index: 6, kind: input, shape index: {}]
  %s7 = inlined_call_operand.vmem [shape: f32[16,96], index: 7, kind: input, shape index: {}, may-alias: {7,13}]
  %s8 = inlined_call_operand.vmem [shape: f32[1,96], index: 8, kind: input, shape index: {}, may-alias: {8,14}]
  %s9 = inlined_call_operand.vmem [shape: f32[96,32], index: 9, kind: input, shape index: {}, may-alias: {9,15}]
  %s10 = inlined_call_operand.vmem [shape: f32[1,32], index: 10, kind: input, shape index: {}, may-alias: {10,16}]
  %s11 = inlined_call_operand.vmem [shape: f32[128,32], index: 11, kind: input, shape index: {}, may-alias: {11,17}]
  %s12 = inlined_call_operand.hbm [shape: f32[16,129], index: 12, kind: output, shape index: {0}]
  %s13 = inlined_call_operand.vmem [shape: f32[16,96], index: 13, kind: output, shape index: {1}, may-alias: {7,13}]
  %s14 = inlined_call_operand.vmem [shape: f32[1,96], index: 14, kind: output, shape index: {2}, may-alias: {8,14}]
  %s15 = inlined_call_operand.vmem [shape: f32[96,32], index: 15, kind: output, shape index: {3}, may-alias: {9,15}]
  %s16 = inlined_call_operand.vmem [shape: f32[1,32], index: 16, kind: output, shape index: {4}, may-alias: {10,16}]
  %s17 = inlined_call_operand.vmem [shape: f32[128,32], index: 17, kind: output, shape index: {5}, may-alias: {11,17}]
  %18 = xla_tuple %s12, %s13, %s14, %s15, %s16, %s17
  %s19 = sld [smem:[#allocation0]]
  $region140: #{moco_forward.1} parent=0
    _
  %s21 = ssub.s32 1, %s19
  %s22 = scalar_select 0, %s21, %s19
  %23 = sst [smem:[#allocation3]] %s0
  $region1: #{moco_forward.1} parent=0
    #allocation4 [shape = 'u8[16384]{0}', space=vmem, size = 0x4000, scoped, tag = 'output window, operand 0']
    #allocation5 [shape = 's32[2]{0}', space=sflag, size = 0x8, scoped, tag = 'scoped memory for moco_forward.1']
    %24 = vsyncpa [#allocation5], 0
    %s25 = scalar_lea.sflag [#allocation5], 1
    %26 = vsyncpa %s25, 0
    loop: start=0, step=1, limit=4
    $region2: #{moco_forward.1} parent=1 // loop_pre_header
      _
    $region3: #{moco_forward.1} parent=1 // loop_header
      %s28 = sphi 0, %s32
      %p29 = scmp.ge.s32.totalorder %s28, 4
      %s36 = sphi 0, %s36
      %s38 = sphi 0, %s36
      %s39 = sphi 0, %s38
      %s53 = sphi 0, %s39
      %s59 = sphi 0, %s61
      %s62 = sphi 0, %s59
      %s63 = sphi 0, %s62
      %s79 = sphi 0, %s63
      %s85 = sphi 0, %s87
      %s88 = sphi 0, %s85
      %s89 = sphi 0, %s88
      %s105 = sphi 0, %s89
      %s109 = sphi 0, %s109
      %s111 = sphi 0, %s109
      %s112 = sphi 0, %s111
      %s126 = sphi 0, %s112
      %s130 = sphi 0, %s130
      %s132 = sphi 0, %s130
      %s133 = sphi 0, %s132
      %s147 = sphi 0, %s133
      %s151 = sphi 0, %s151
      %s153 = sphi 0, %s151
      %s154 = sphi 0, %s153
      %s168 = sphi 0, %s154
      %s172 = sphi 0, %s172
      %s174 = sphi 0, %s172
      %s175 = sphi 0, %s174
      %s189 = sphi 0, %s175
      %s193 = sphi 0, %s193
      %s195 = sphi 0, %s193
      %s196 = sphi 0, %s195
      %s210 = sphi 0, %s196
      %s214 = sphi 0, %s214
      %s216 = sphi 0, %s214
      %s217 = sphi 0, %s216
      %s231 = sphi 0, %s217
      %s235 = sphi 0, %s235
      %s237 = sphi 0, %s235
      %s238 = sphi 0, %s237
      %s252 = sphi 0, %s238
      %s256 = sphi 0, %s256
      %s258 = sphi 0, %s256
      %s259 = sphi 0, %s258
      %s273 = sphi 0, %s259
      %s277 = sphi 0, %s277
      %s279 = sphi 0, %s277
      %s280 = sphi 0, %s279
      %s294 = sphi 0, %s280
      %s300 = sphi 0, %s302
      %s303 = sphi 0, %s300
      %s304 = sphi 0, %s303
      %s320 = sphi 0, %s304
      %s324 = sphi 0, %s324
      %s326 = sphi 0, %s324
      %s327 = sphi 0, %s326
      %s341 = sphi 0, %s327
      %s345 = sphi 0, %s345
      %s347 = sphi 0, %s345
      %s348 = sphi 0, %s347
      %s362 = sphi 0, %s348
      %s366 = sphi 0, %s366
      %s368 = sphi 0, %s366
      %s369 = sphi 0, %s368
      %s383 = sphi 0, %s369
      %s387 = sphi 0, %s387
      %s389 = sphi 0, %s387
      %s390 = sphi 0, %s389
      %s404 = sphi 0, %s390
      %s408 = sphi 0, %s408
      %s410 = sphi 0, %s408
      %s411 = sphi 0, %s410
      %s425 = sphi 0, %s411
    $region4: #{moco_forward.1} parent=1 // loop_header_branch
      %31 = sbr.rel (%p29) target = $region8
    $region5: #{moco_forward.1} parent=1 // loop_body
      %s33 = ssub.s32 %s28, 1
      %s34 = ssub.s32 %s28, 2
      %s35 = sadd.s32 %s28, 1
      %s37 = sadd.s32 %s36, 1
      %p40 = scmp.eq.s32.totalorder %s28, 1
      %p41 = scmp.ne.s32.totalorder %s36, %s38
      %p42 = scmp.eq.s32.totalorder %s28, 0
      %p43 = por %p41, %p42
      %p44 = scmp.ne.s32.totalorder %s36, %s38
      %p45 = scmp.eq.s32.totalorder %s33, 1
      %p46 = por %p44, %p45
      %p47 = scmp.ne.s32.totalorder %s38, %s39
      %p48 = scmp.eq.s32.totalorder %s33, 0
      %p49 = por %p47, %p48
      %p50 = scmp.ne.s32.totalorder %s38, %s39
      %p51 = scmp.eq.s32.totalorder %s34, 1
      %p52 = por %p50, %p51
      %p54 = scmp.ne.s32.totalorder %s39, %s53
      %p55 = scmp.eq.s32.totalorder %s34, 0
      %p56 = por %p54, %p55
      %s57 = ssub.s32 %s28, %s35
      %p58 = scmp.eq.s32.totalorder %s57, 0
      %s60 = sadd.s32 %s59, 1
      %s61 = scalar_select %p58, %s59, %s60
      %p64 = pneg %p58
      %p65 = scmp.eq.s32.totalorder %s28, 1
      %p66 = por %p64, %p65
      %p67 = scmp.ne.s32.totalorder %s59, %s62
      %p68 = scmp.eq.s32.totalorder %s28, 0
      %p69 = por %p67, %p68
      %p70 = scmp.ne.s32.totalorder %s59, %s62
      %p71 = scmp.eq.s32.totalorder %s33, 1
      %p72 = por %p70, %p71
      %p73 = scmp.ne.s32.totalorder %s62, %s63
      %p74 = scmp.eq.s32.totalorder %s33, 0
      %p75 = por %p73, %p74
      %p76 = scmp.ne.s32.totalorder %s62, %s63
      %p77 = scmp.eq.s32.totalorder %s34, 1
      %p78 = por %p76, %p77
      %p80 = scmp.ne.s32.totalorder %s63, %s79
      %p81 = scmp.eq.s32.totalorder %s34, 0
      %p82 = por %p80, %p81
      %s83 = ssub.s32 %s28, %s35
      %p84 = scmp.eq.s32.totalorder %s83, 0
      %s86 = sadd.s32 %s85, 1
      %s87 = scalar_select %p84, %s85, %s86
      %p90 = pneg %p84
      %p91 = scmp.eq.s32.totalorder %s28, 1
      %p92 = por %p90, %p91
      %p93 = scmp.ne.s32.totalorder %s85, %s88
      %p94 = scmp.eq.s32.totalorder %s28, 0
      %p95 = por %p93, %p94
      %p96 = scmp.ne.s32.totalorder %s85, %s88
      %p97 = scmp.eq.s32.totalorder %s33, 1
      %p98 = por %p96, %p97
      %p99 = scmp.ne.s32.totalorder %s88, %s89
      %p100 = scmp.eq.s32.totalorder %s33, 0
      %p101 = por %p99, %p100
      %p102 = scmp.ne.s32.totalorder %s88, %s89
      %p103 = scmp.eq.s32.totalorder %s34, 1
      %p104 = por %p102, %p103
      %p106 = scmp.ne.s32.totalorder %s89, %s105
      %p107 = scmp.eq.s32.totalorder %s34, 0
      %p108 = por %p106, %p107
      %s110 = sadd.s32 %s109, 1
      %p113 = scmp.eq.s32.totalorder %s28, 1
      %p114 = scmp.ne.s32.totalorder %s109, %s111
      %p115 = scmp.eq.s32.totalorder %s28, 0
      %p116 = por %p114, %p115
      %p117 = scmp.ne.s32.totalorder %s109, %s111
      %p118 = scmp.eq.s32.totalorder %s33, 1
      %p119 = por %p117, %p118
      %p120 = scmp.ne.s32.totalorder %s111, %s112
      %p121 = scmp.eq.s32.totalorder %s33, 0
      %p122 = por %p120, %p121
      %p123 = scmp.ne.s32.totalorder %s111, %s112
      %p124 = scmp.eq.s32.totalorder %s34, 1
      %p125 = por %p123, %p124
      %p127 = scmp.ne.s32.totalorder %s112, %s126
      %p128 = scmp.eq.s32.totalorder %s34, 0
      %p129 = por %p127, %p128
      %s131 = sadd.s32 %s130, 1
      %p134 = scmp.eq.s32.totalorder %s28, 1
      %p135 = scmp.ne.s32.totalorder %s130, %s132
      %p136 = scmp.eq.s32.totalorder %s28, 0
      %p137 = por %p135, %p136
      %p138 = scmp.ne.s32.totalorder %s130, %s132
      %p139 = scmp.eq.s32.totalorder %s33, 1
      %p140 = por %p138, %p139
      %p141 = scmp.ne.s32.totalorder %s132, %s133
      %p142 = scmp.eq.s32.totalorder %s33, 0
      %p143 = por %p141, %p142
      %p144 = scmp.ne.s32.totalorder %s132, %s133
      %p145 = scmp.eq.s32.totalorder %s34, 1
      %p146 = por %p144, %p145
      %p148 = scmp.ne.s32.totalorder %s133, %s147
      %p149 = scmp.eq.s32.totalorder %s34, 0
      %p150 = por %p148, %p149
      %s152 = sadd.s32 %s151, 1
      %p155 = scmp.eq.s32.totalorder %s28, 1
      %p156 = scmp.ne.s32.totalorder %s151, %s153
      %p157 = scmp.eq.s32.totalorder %s28, 0
      %p158 = por %p156, %p157
      %p159 = scmp.ne.s32.totalorder %s151, %s153
      %p160 = scmp.eq.s32.totalorder %s33, 1
      %p161 = por %p159, %p160
      %p162 = scmp.ne.s32.totalorder %s153, %s154
      %p163 = scmp.eq.s32.totalorder %s33, 0
      %p164 = por %p162, %p163
      %p165 = scmp.ne.s32.totalorder %s153, %s154
      %p166 = scmp.eq.s32.totalorder %s34, 1
      %p167 = por %p165, %p166
      %p169 = scmp.ne.s32.totalorder %s154, %s168
      %p170 = scmp.eq.s32.totalorder %s34, 0
      %p171 = por %p169, %p170
      %s173 = sadd.s32 %s172, 1
      %p176 = scmp.eq.s32.totalorder %s28, 1
      %p177 = scmp.ne.s32.totalorder %s172, %s174
      %p178 = scmp.eq.s32.totalorder %s28, 0
      %p179 = por %p177, %p178
      %p180 = scmp.ne.s32.totalorder %s172, %s174
      %p181 = scmp.eq.s32.totalorder %s33, 1
      %p182 = por %p180, %p181
      %p183 = scmp.ne.s32.totalorder %s174, %s175
      %p184 = scmp.eq.s32.totalorder %s33, 0
      %p185 = por %p183, %p184
      %p186 = scmp.ne.s32.totalorder %s174, %s175
      %p187 = scmp.eq.s32.totalorder %s34, 1
      %p188 = por %p186, %p187
      %p190 = scmp.ne.s32.totalorder %s175, %s189
      %p191 = scmp.eq.s32.totalorder %s34, 0
      %p192 = por %p190, %p191
      %s194 = sadd.s32 %s193, 1
      %p197 = scmp.eq.s32.totalorder %s28, 1
      %p198 = scmp.ne.s32.totalorder %s193, %s195
      %p199 = scmp.eq.s32.totalorder %s28, 0
      %p200 = por %p198, %p199
      %p201 = scmp.ne.s32.totalorder %s193, %s195
      %p202 = scmp.eq.s32.totalorder %s33, 1
      %p203 = por %p201, %p202
      %p204 = scmp.ne.s32.totalorder %s195, %s196
      %p205 = scmp.eq.s32.totalorder %s33, 0
      %p206 = por %p204, %p205
      %p207 = scmp.ne.s32.totalorder %s195, %s196
      %p208 = scmp.eq.s32.totalorder %s34, 1
      %p209 = por %p207, %p208
      %p211 = scmp.ne.s32.totalorder %s196, %s210
      %p212 = scmp.eq.s32.totalorder %s34, 0
      %p213 = por %p211, %p212
      %s215 = sadd.s32 %s214, 1
      %p218 = scmp.eq.s32.totalorder %s28, 1
      %p219 = scmp.ne.s32.totalorder %s214, %s216
      %p220 = scmp.eq.s32.totalorder %s28, 0
      %p221 = por %p219, %p220
      %p222 = scmp.ne.s32.totalorder %s214, %s216
      %p223 = scmp.eq.s32.totalorder %s33, 1
      %p224 = por %p222, %p223
      %p225 = scmp.ne.s32.totalorder %s216, %s217
      %p226 = scmp.eq.s32.totalorder %s33, 0
      %p227 = por %p225, %p226
      %p228 = scmp.ne.s32.totalorder %s216, %s217
      %p229 = scmp.eq.s32.totalorder %s34, 1
      %p230 = por %p228, %p229
      %p232 = scmp.ne.s32.totalorder %s217, %s231
      %p233 = scmp.eq.s32.totalorder %s34, 0
      %p234 = por %p232, %p233
      %s236 = sadd.s32 %s235, 1
      %p239 = scmp.eq.s32.totalorder %s28, 1
      %p240 = scmp.ne.s32.totalorder %s235, %s237
      %p241 = scmp.eq.s32.totalorder %s28, 0
      %p242 = por %p240, %p241
      %p243 = scmp.ne.s32.totalorder %s235, %s237
      %p244 = scmp.eq.s32.totalorder %s33, 1
      %p245 = por %p243, %p244
      %p246 = scmp.ne.s32.totalorder %s237, %s238
      %p247 = scmp.eq.s32.totalorder %s33, 0
      %p248 = por %p246, %p247
      %p249 = scmp.ne.s32.totalorder %s237, %s238
      %p250 = scmp.eq.s32.totalorder %s34, 1
      %p251 = por %p249, %p250
      %p253 = scmp.ne.s32.totalorder %s238, %s252
      %p254 = scmp.eq.s32.totalorder %s34, 0
      %p255 = por %p253, %p254
      %s257 = sadd.s32 %s256, 1
      %p260 = scmp.eq.s32.totalorder %s28, 1
      %p261 = scmp.ne.s32.totalorder %s256, %s258
      %p262 = scmp.eq.s32.totalorder %s28, 0
      %p263 = por %p261, %p262
      %p264 = scmp.ne.s32.totalorder %s256, %s258
      %p265 = scmp.eq.s32.totalorder %s33, 1
      %p266 = por %p264, %p265
      %p267 = scmp.ne.s32.totalorder %s258, %s259
      %p268 = scmp.eq.s32.totalorder %s33, 0
      %p269 = por %p267, %p268
      %p270 = scmp.ne.s32.totalorder %s258, %s259
      %p271 = scmp.eq.s32.totalorder %s34, 1
      %p272 = por %p270, %p271
      %p274 = scmp.ne.s32.totalorder %s259, %s273
      %p275 = scmp.eq.s32.totalorder %s34, 0
      %p276 = por %p274, %p275
      %s278 = sadd.s32 %s277, 1
      %p281 = scmp.eq.s32.totalorder %s28, 1
      %p282 = scmp.ne.s32.totalorder %s277, %s279
      %p283 = scmp.eq.s32.totalorder %s28, 0
      %p284 = por %p282, %p283
      %p285 = scmp.ne.s32.totalorder %s277, %s279
      %p286 = scmp.eq.s32.totalorder %s33, 1
      %p287 = por %p285, %p286
      %p288 = scmp.ne.s32.totalorder %s279, %s280
      %p289 = scmp.eq.s32.totalorder %s33, 0
      %p290 = por %p288, %p289
      %p291 = scmp.ne.s32.totalorder %s279, %s280
      %p292 = scmp.eq.s32.totalorder %s34, 1
      %p293 = por %p291, %p292
      %p295 = scmp.ne.s32.totalorder %s280, %s294
      %p296 = scmp.eq.s32.totalorder %s34, 0
      %p297 = por %p295, %p296
      %s298 = ssub.s32 %s28, %s35
      %p299 = scmp.eq.s32.totalorder %s298, 0
      %s301 = sadd.s32 %s300, 1
      %s302 = scalar_select %p299, %s300, %s301
      %p305 = pneg %p299
      %p306 = scmp.eq.s32.totalorder %s28, 1
      %p307 = por %p305, %p306
      %p308 = scmp.ne.s32.totalorder %s300, %s303
      %p309 = scmp.eq.s32.totalorder %s28, 0
      %p310 = por %p308, %p309
      %p311 = scmp.ne.s32.totalorder %s300, %s303
      %p312 = scmp.eq.s32.totalorder %s33, 1
      %p313 = por %p311, %p312
      %p314 = scmp.ne.s32.totalorder %s303, %s304
      %p315 = scmp.eq.s32.totalorder %s33, 0
      %p316 = por %p314, %p315
      %p317 = scmp.ne.s32.totalorder %s303, %s304
      %p318 = scmp.eq.s32.totalorder %s34, 1
      %p319 = por %p317, %p318
      %p321 = scmp.ne.s32.totalorder %s304, %s320
      %p322 = scmp.eq.s32.totalorder %s34, 0
      %p323 = por %p321, %p322
      %s325 = sadd.s32 %s324, 1
      %p328 = scmp.eq.s32.totalorder %s28, 1
      %p329 = scmp.ne.s32.totalorder %s324, %s326
      %p330 = scmp.eq.s32.totalorder %s28, 0
      %p331 = por %p329, %p330
      %p332 = scmp.ne.s32.totalorder %s324, %s326
      %p333 = scmp.eq.s32.totalorder %s33, 1
      %p334 = por %p332, %p333
      %p335 = scmp.ne.s32.totalorder %s326, %s327
      %p336 = scmp.eq.s32.totalorder %s33, 0
      %p337 = por %p335, %p336
      %p338 = scmp.ne.s32.totalorder %s326, %s327
      %p339 = scmp.eq.s32.totalorder %s34, 1
      %p340 = por %p338, %p339
      %p342 = scmp.ne.s32.totalorder %s327, %s341
      %p343 = scmp.eq.s32.totalorder %s34, 0
      %p344 = por %p342, %p343
      %s346 = sadd.s32 %s345, 1
      %p349 = scmp.eq.s32.totalorder %s28, 1
      %p350 = scmp.ne.s32.totalorder %s345, %s347
      %p351 = scmp.eq.s32.totalorder %s28, 0
      %p352 = por %p350, %p351
      %p353 = scmp.ne.s32.totalorder %s345, %s347
      %p354 = scmp.eq.s32.totalorder %s33, 1
      %p355 = por %p353, %p354
      %p356 = scmp.ne.s32.totalorder %s347, %s348
      %p357 = scmp.eq.s32.totalorder %s33, 0
      %p358 = por %p356, %p357
      %p359 = scmp.ne.s32.totalorder %s347, %s348
      %p360 = scmp.eq.s32.totalorder %s34, 1
      %p361 = por %p359, %p360
      %p363 = scmp.ne.s32.totalorder %s348, %s362
      %p364 = scmp.eq.s32.totalorder %s34, 0
      %p365 = por %p363, %p364
      %s367 = sadd.s32 %s366, 1
      %p370 = scmp.eq.s32.totalorder %s28, 1
      %p371 = scmp.ne.s32.totalorder %s366, %s368
      %p372 = scmp.eq.s32.totalorder %s28, 0
      %p373 = por %p371, %p372
      %p374 = scmp.ne.s32.totalorder %s366, %s368
      %p375 = scmp.eq.s32.totalorder %s33, 1
      %p376 = por %p374, %p375
      %p377 = scmp.ne.s32.totalorder %s368, %s369
      %p378 = scmp.eq.s32.totalorder %s33, 0
      %p379 = por %p377, %p378
      %p380 = scmp.ne.s32.totalorder %s368, %s369
      %p381 = scmp.eq.s32.totalorder %s34, 1
      %p382 = por %p380, %p381
      %p384 = scmp.ne.s32.totalorder %s369, %s383
      %p385 = scmp.eq.s32.totalorder %s34, 0
      %p386 = por %p384, %p385
      %s388 = sadd.s32 %s387, 1
      %p391 = scmp.eq.s32.totalorder %s28, 1
      %p392 = scmp.ne.s32.totalorder %s387, %s389
      %p393 = scmp.eq.s32.totalorder %s28, 0
      %p394 = por %p392, %p393
      %p395 = scmp.ne.s32.totalorder %s387, %s389
      %p396 = scmp.eq.s32.totalorder %s33, 1
      %p397 = por %p395, %p396
      %p398 = scmp.ne.s32.totalorder %s389, %s390
      %p399 = scmp.eq.s32.totalorder %s33, 0
      %p400 = por %p398, %p399
      %p401 = scmp.ne.s32.totalorder %s389, %s390
      %p402 = scmp.eq.s32.totalorder %s34, 1
      %p403 = por %p401, %p402
      %p405 = scmp.ne.s32.totalorder %s390, %s404
      %p406 = scmp.eq.s32.totalorder %s34, 0
      %p407 = por %p405, %p406
      %s409 = sadd.s32 %s408, 1
      %p412 = scmp.eq.s32.totalorder %s28, 1
      %p413 = scmp.ne.s32.totalorder %s408, %s410
      %p414 = scmp.eq.s32.totalorder %s28, 0
      %p415 = por %p413, %p414
      %p416 = scmp.ne.s32.totalorder %s408, %s410
      %p417 = scmp.eq.s32.totalorder %s33, 1
      %p418 = por %p416, %p417
      %p419 = scmp.ne.s32.totalorder %s410, %s411
      %p420 = scmp.eq.s32.totalorder %s33, 0
      %p421 = por %p419, %p420
      %p422 = scmp.ne.s32.totalorder %s410, %s411
      %p423 = scmp.eq.s32.totalorder %s34, 1
      %p424 = por %p422, %p423
      %p426 = scmp.ne.s32.totalorder %s411, %s425
      %p427 = scmp.eq.s32.totalorder %s34, 0
      %p428 = por %p426, %p427
      %p429 = scmp.le.s32.totalorder 1, %s28
      %p430 = scmp.lt.s32.totalorder %s28, 3
      %p431 = pnand %p429, %p430
      %p432 = pneg %p431
      // Predicated region
      $region9: #{moco_forward.1} parent=5 // pred_check
        _
      $region10: #{moco_forward.1} parent=5 // pred_check_branch
        %434 = sbr.rel (%p431) target = $region12
      $region11: #{moco_forward.1} parent=5 // pred_region
        %s435 = ssub.s32 %s28, 1
        // Predicated region
        $region13: #{moco_forward.1} parent=11 // pred_check
          %p436 = pneg %p49
        $region14: #{moco_forward.1} parent=11 // pred_check_branch
          %438 = sbr.rel (%p436) target = $region16
        $region15: #{moco_forward.1} parent=11 // pred_region
          _
        $region16: #{moco_forward.1} parent=11 // pred_fallthru
          _
        // Predicated region
        $region17: #{moco_forward.1} parent=11 // pred_check
          %p439 = pneg %p122
        $region18: #{moco_forward.1} parent=11 // pred_check_branch
          %441 = sbr.rel (%p439) target = $region20
        $region19: #{moco_forward.1} parent=11 // pred_region
          _
        $region20: #{moco_forward.1} parent=11 // pred_fallthru
          _
        // Predicated region
        $region21: #{moco_forward.1} parent=11 // pred_check
          %p442 = pneg %p143
        $region22: #{moco_forward.1} parent=11 // pred_check_branch
          %444 = sbr.rel (%p442) target = $region24
        $region23: #{moco_forward.1} parent=11 // pred_region
          _
        $region24: #{moco_forward.1} parent=11 // pred_fallthru
          _
        // Predicated region
        $region25: #{moco_forward.1} parent=11 // pred_check
          %p445 = pneg %p164
        $region26: #{moco_forward.1} parent=11 // pred_check_branch
          %447 = sbr.rel (%p445) target = $region28
        $region27: #{moco_forward.1} parent=11 // pred_region
          _
        $region28: #{moco_forward.1} parent=11 // pred_fallthru
          _
        // Predicated region
        $region29: #{moco_forward.1} parent=11 // pred_check
          %p448 = pneg %p185
        $region30: #{moco_forward.1} parent=11 // pred_check_branch
          %450 = sbr.rel (%p448) target = $region32
        $region31: #{moco_forward.1} parent=11 // pred_region
          _
        $region32: #{moco_forward.1} parent=11 // pred_fallthru
          _
        // Predicated region
        $region33: #{moco_forward.1} parent=11 // pred_check
          %p451 = pneg %p206
        $region34: #{moco_forward.1} parent=11 // pred_check_branch
          %453 = sbr.rel (%p451) target = $region36
        $region35: #{moco_forward.1} parent=11 // pred_region
          _
        $region36: #{moco_forward.1} parent=11 // pred_fallthru
          _
        // Predicated region
        $region37: #{moco_forward.1} parent=11 // pred_check
          %p454 = pneg %p227
        $region38: #{moco_forward.1} parent=11 // pred_check_branch
          %456 = sbr.rel (%p454) target = $region40
        $region39: #{moco_forward.1} parent=11 // pred_region
          _
        $region40: #{moco_forward.1} parent=11 // pred_fallthru
          _
        // Predicated region
        $region41: #{moco_forward.1} parent=11 // pred_check
          %p457 = pneg %p248
        $region42: #{moco_forward.1} parent=11 // pred_check_branch
          %459 = sbr.rel (%p457) target = $region44
        $region43: #{moco_forward.1} parent=11 // pred_region
          _
        $region44: #{moco_forward.1} parent=11 // pred_fallthru
          _
        // Predicated region
        $region45: #{moco_forward.1} parent=11 // pred_check
          %p460 = pneg %p269
        $region46: #{moco_forward.1} parent=11 // pred_check_branch
          %462 = sbr.rel (%p460) target = $region48
        $region47: #{moco_forward.1} parent=11 // pred_region
          _
        $region48: #{moco_forward.1} parent=11 // pred_fallthru
          _
        // Predicated region
        $region49: #{moco_forward.1} parent=11 // pred_check
          %p463 = pneg %p290
        $region50: #{moco_forward.1} parent=11 // pred_check_branch
          %465 = sbr.rel (%p463) target = $region52
        $region51: #{moco_forward.1} parent=11 // pred_region
          _
        $region52: #{moco_forward.1} parent=11 // pred_fallthru
          _
      $region12: #{moco_forward.1} parent=5 // pred_fallthru
        _
      %p466 = scmp.lt.s32.totalorder %s28, 2
      // Predicated region
      $region53: #{moco_forward.1} parent=5 // pred_check
        %p467 = pneg %p466
      $region54: #{moco_forward.1} parent=5 // pred_check_branch
        %469 = sbr.rel (%p467) target = $region56
      $region55: #{moco_forward.1} parent=5 // pred_region
        // Predicated region
        $region57: #{moco_forward.1} parent=55 // pred_check
          %p470 = pneg %p69
        $region58: #{moco_forward.1} parent=55 // pred_check_branch
          %472 = sbr.rel (%p470) target = $region60
        $region59: #{moco_forward.1} parent=55 // pred_region
          %p473 = scmp.lt.s32.totalorder %s28, 1
          %s474 = scalar_select %p473, %s28, 1
          %s475 = smul.addr %s474, 8
          %s476 = scalar_lea.vmem %s1, %s475
        $region60: #{moco_forward.1} parent=55 // pred_fallthru
          _
        // Predicated region
        $region61: #{moco_forward.1} parent=55 // pred_check
          %p477 = pneg %p95
        $region62: #{moco_forward.1} parent=55 // pred_check_branch
          %479 = sbr.rel (%p477) target = $region64
        $region63: #{moco_forward.1} parent=55 // pred_region
          %p480 = scmp.lt.s32.totalorder %s28, 1
          %s481 = scalar_select %p480, %s28, 1
          %s482 = smul.addr %s481, 8
          %s483 = scalar_lea.vmem %s2, %s482
        $region64: #{moco_forward.1} parent=55 // pred_fallthru
          _
      $region56: #{moco_forward.1} parent=5 // pred_fallthru
        _
      %p484 = scmp.le.s32.totalorder 1, %s28
      %p485 = scmp.lt.s32.totalorder %s28, 3
      %p486 = pnand %p484, %p485
      %p487 = pneg %p486
      // Predicated region
      $region65: #{moco_forward.1} parent=5 // pred_check
        _
      $region66: #{moco_forward.1} parent=5 // pred_check_branch
        %489 = sbr.rel (%p486) target = $region68
      $region67: #{moco_forward.1} parent=5 // pred_region
        %s490 = ssub.s32 %s28, 1
        %p491 = pneg %p49
        %p492 = pneg %p46
        %p493 = scmp.lt.s32.totalorder %s33, 1
        %s494 = scalar_select %p493, %s33, 1
        %s495 = smul.addr %s494, 8
        %s496 = scalar_lea.vmem %s1, %s495
        %p497 = pneg %p75
        %p498 = pneg %p72
        %p499 = scmp.lt.s32.totalorder %s33, 1
        %s500 = scalar_select %p499, %s33, 1
        %s501 = smul.addr %s500, 8
        %s502 = scalar_lea.vmem %s2, %s501
        %p503 = pneg %p101
        %p504 = pneg %p98
        %p505 = pneg %p122
        %p506 = pneg %p119
        %p507 = pneg %p143
        %p508 = pneg %p140
        %p509 = pneg %p164
        %p510 = pneg %p161
        %p511 = pneg %p185
        %p512 = pneg %p182
        %p513 = pneg %p206
        %p514 = pneg %p203
        %p515 = pneg %p227
        %p516 = pneg %p224
        %p517 = pneg %p248
        %p518 = pneg %p245
        %p519 = pneg %p269
        %p520 = pneg %p266
        %p521 = pneg %p290
        %p522 = pneg %p287
        %p523 = pneg %p316
        %p524 = pneg %p313
        %s525 = sand.u32 %s303, 1
        %s526 = scalar_lea.sflag [#allocation5], %s525
        %s527 = sand.u32 %s303, 1
        %s528 = smul.addr %s527, 16
        %s529 = scalar_lea.vmem [#allocation4], %s528
        %p530 = pneg %p337
        %p531 = pneg %p334
        %p532 = pneg %p358
        %p533 = pneg %p355
        %p534 = pneg %p379
        %p535 = pneg %p376
        %p536 = pneg %p400
        %p537 = pneg %p397
        %p538 = pneg %p421
        %p539 = pneg %p418
        %p540 = scmp.lt.s32.totalorder %s33, 1
        %s541 = scalar_select %p540, %s33, 1
        %s542 = smul.addr %s541, 8
        %s543 = scalar_lea.vmem %s1, %s542
        %p544 = scmp.lt.s32.totalorder %s33, 1
        %s545 = scalar_select %p544, %s33, 1
        %s546 = smul.addr %s545, 8
        %s547 = scalar_lea.vmem %s2, %s546
        %v549 = vld [vmem:[%s7] sm:$0xff]
        %v550 = vld [vmem:[%s7 + $0x8] sm:$0xff]
        %v551 = vmul.f32 %v549, 0.999
        %v552 = vmul.f32 %v550, 0.999
        %v553 = vld [vmem:[%s3] sm:$0xff]
        %v554 = vld [vmem:[%s3 + $0x8] sm:$0xff]
        %v555 = vmul.f32 %v553, 0.001
        %v556 = vmul.f32 %v554, 0.001
        %v557 = vadd.f32 %v551, %v555
        %v558 = vadd.f32 %v552, %v556
        %v559 = vld [vmem:[%s8] sm:$0x1]
        %v560 = vmul.f32 %v559, 0.999
        %v561 = vld [vmem:[%s4] sm:$0x1]
        %v562 = vmul.f32 %v561, 0.001
        %v563 = vadd.f32 %v560, %v562
        %v564 = vld [vmem:[%s9] sm:$0xff]
        %v565 = vld [vmem:[%s9 + $0x8] sm:$0xff]
        %v566 = vld [vmem:[%s9 + $0x10] sm:$0xff]
        %v567 = vld [vmem:[%s9 + $0x18] sm:$0xff]
        %v568 = vld [vmem:[%s9 + $0x20] sm:$0xff]
        %v569 = vld [vmem:[%s9 + $0x28] sm:$0xff]
        %v570 = vld [vmem:[%s9 + $0x30] sm:$0xff]
        %v571 = vld [vmem:[%s9 + $0x38] sm:$0xff]
        %v572 = vld [vmem:[%s9 + $0x40] sm:$0xff]
        %v573 = vld [vmem:[%s9 + $0x48] sm:$0xff]
        %v574 = vld [vmem:[%s9 + $0x50] sm:$0xff]
        %v575 = vld [vmem:[%s9 + $0x58] sm:$0xff]
        %v576 = vmul.f32 %v564, 0.999
        %v577 = vmul.f32 %v565, 0.999
        %v578 = vmul.f32 %v566, 0.999
        %v579 = vmul.f32 %v567, 0.999
        %v580 = vmul.f32 %v568, 0.999
        %v581 = vmul.f32 %v569, 0.999
        %v582 = vmul.f32 %v570, 0.999
        %v583 = vmul.f32 %v571, 0.999
        %v584 = vmul.f32 %v572, 0.999
        %v585 = vmul.f32 %v573, 0.999
        %v586 = vmul.f32 %v574, 0.999
        %v587 = vmul.f32 %v575, 0.999
        %v588 = vld [vmem:[%s5] sm:$0xff]
        %v589 = vld [vmem:[%s5 + $0x8] sm:$0xff]
        %v590 = vld [vmem:[%s5 + $0x10] sm:$0xff]
        %v591 = vld [vmem:[%s5 + $0x18] sm:$0xff]
        %v592 = vld [vmem:[%s5 + $0x20] sm:$0xff]
        %v593 = vld [vmem:[%s5 + $0x28] sm:$0xff]
        %v594 = vld [vmem:[%s5 + $0x30] sm:$0xff]
        %v595 = vld [vmem:[%s5 + $0x38] sm:$0xff]
        %v596 = vld [vmem:[%s5 + $0x40] sm:$0xff]
        %v597 = vld [vmem:[%s5 + $0x48] sm:$0xff]
        %v598 = vld [vmem:[%s5 + $0x50] sm:$0xff]
        %v599 = vld [vmem:[%s5 + $0x58] sm:$0xff]
        %v600 = vmul.f32 %v588, 0.001
        %v601 = vmul.f32 %v589, 0.001
        %v602 = vmul.f32 %v590, 0.001
        %v603 = vmul.f32 %v591, 0.001
        %v604 = vmul.f32 %v592, 0.001
        %v605 = vmul.f32 %v593, 0.001
        %v606 = vmul.f32 %v594, 0.001
        %v607 = vmul.f32 %v595, 0.001
        %v608 = vmul.f32 %v596, 0.001
        %v609 = vmul.f32 %v597, 0.001
        %v610 = vmul.f32 %v598, 0.001
        %v611 = vmul.f32 %v599, 0.001
        %v612 = vadd.f32 %v576, %v600
        %v613 = vadd.f32 %v577, %v601
        %v614 = vadd.f32 %v578, %v602
        %v615 = vadd.f32 %v579, %v603
        %v616 = vadd.f32 %v580, %v604
        %v617 = vadd.f32 %v581, %v605
        %v618 = vadd.f32 %v582, %v606
        %v619 = vadd.f32 %v583, %v607
        %v620 = vadd.f32 %v584, %v608
        %v621 = vadd.f32 %v585, %v609
        %v622 = vadd.f32 %v586, %v610
        %v623 = vadd.f32 %v587, %v611
        %v624 = vld [vmem:[%s10] sm:$0x1]
        %v625 = vmul.f32 %v624, 0.999
        %v626 = vld [vmem:[%s6] sm:$0x1]
        %v627 = vmul.f32 %v626, 0.001
        %v628 = vadd.f32 %v625, %v627
        %p629 = scmp.eq.s32.totalorder %s33, 0
        // Predicated region
        $region69: #{moco_forward.1} parent=67 // pred_check
          %p630 = pneg %p629
        $region70: #{moco_forward.1} parent=67 // pred_check_branch
          %632 = sbr.rel (%p630) target = $region72
        $region71: #{moco_forward.1} parent=67 // pred_region
          %vm633 = vcmask 785408
          %634 = vst.msk [vmem:[%s13] sm:$0xff] %vm633, %v557
          %635 = vst.msk [vmem:[%s13 + $0x8] sm:$0xff] %vm633, %v558
          %vm636 = vcmask 778240
          %637 = vst.msk [vmem:[%s14] sm:$0x1] %vm636, %v563
          %vm638 = vcmask 261120
          %639 = vst.msk [vmem:[%s15] sm:$0xff] %vm638, %v612
          %640 = vst.msk [vmem:[%s15 + $0x8] sm:$0xff] %vm638, %v613
          %641 = vst.msk [vmem:[%s15 + $0x10] sm:$0xff] %vm638, %v614
          %642 = vst.msk [vmem:[%s15 + $0x18] sm:$0xff] %vm638, %v615
          %643 = vst.msk [vmem:[%s15 + $0x20] sm:$0xff] %vm638, %v616
          %644 = vst.msk [vmem:[%s15 + $0x28] sm:$0xff] %vm638, %v617
          %645 = vst.msk [vmem:[%s15 + $0x30] sm:$0xff] %vm638, %v618
          %646 = vst.msk [vmem:[%s15 + $0x38] sm:$0xff] %vm638, %v619
          %647 = vst.msk [vmem:[%s15 + $0x40] sm:$0xff] %vm638, %v620
          %648 = vst.msk [vmem:[%s15 + $0x48] sm:$0xff] %vm638, %v621
          %649 = vst.msk [vmem:[%s15 + $0x50] sm:$0xff] %vm638, %v622
          %650 = vst.msk [vmem:[%s15 + $0x58] sm:$0xff] %vm638, %v623
          %vm651 = vcmask 253952
          %652 = vst.msk [vmem:[%s16] sm:$0x1] %vm651, %v628
          %v653 = vld [vmem:[%s11] sm:$0xff]
          %v654 = vld [vmem:[%s11 + $0x8] sm:$0xff]
          %v655 = vld [vmem:[%s11 + $0x10] sm:$0xff]
          %v656 = vld [vmem:[%s11 + $0x18] sm:$0xff]
          %v657 = vld [vmem:[%s11 + $0x20] sm:$0xff]
          %v658 = vld [vmem:[%s11 + $0x28] sm:$0xff]
          %v659 = vld [vmem:[%s11 + $0x30] sm:$0xff]
          %v660 = vld [vmem:[%s11 + $0x38] sm:$0xff]
          %v661 = vld [vmem:[%s11 + $0x40] sm:$0xff]
          %v662 = vld [vmem:[%s11 + $0x48] sm:$0xff]
          %v663 = vld [vmem:[%s11 + $0x50] sm:$0xff]
          %v664 = vld [vmem:[%s11 + $0x58] sm:$0xff]
          %v665 = vld [vmem:[%s11 + $0x60] sm:$0xff]
          %v666 = vld [vmem:[%s11 + $0x68] sm:$0xff]
          %v667 = vld [vmem:[%s11 + $0x70] sm:$0xff]
          %v668 = vld [vmem:[%s11 + $0x78] sm:$0xff]
          %669 = vst.msk [vmem:[%s17] sm:$0xff] %vm638, %v653
          %670 = vst.msk [vmem:[%s17 + $0x8] sm:$0xff] %vm638, %v654
          %671 = vst.msk [vmem:[%s17 + $0x10] sm:$0xff] %vm638, %v655
          %672 = vst.msk [vmem:[%s17 + $0x18] sm:$0xff] %vm638, %v656
          %673 = vst.msk [vmem:[%s17 + $0x20] sm:$0xff] %vm638, %v657
          %674 = vst.msk [vmem:[%s17 + $0x28] sm:$0xff] %vm638, %v658
          %675 = vst.msk [vmem:[%s17 + $0x30] sm:$0xff] %vm638, %v659
          %676 = vst.msk [vmem:[%s17 + $0x38] sm:$0xff] %vm638, %v660
          %677 = vst.msk [vmem:[%s17 + $0x40] sm:$0xff] %vm638, %v661
          %678 = vst.msk [vmem:[%s17 + $0x48] sm:$0xff] %vm638, %v662
          %679 = vst.msk [vmem:[%s17 + $0x50] sm:$0xff] %vm638, %v663
          %680 = vst.msk [vmem:[%s17 + $0x58] sm:$0xff] %vm638, %v664
          %681 = vst.msk [vmem:[%s17 + $0x60] sm:$0xff] %vm638, %v665
          %682 = vst.msk [vmem:[%s17 + $0x68] sm:$0xff] %vm638, %v666
          %683 = vst.msk [vmem:[%s17 + $0x70] sm:$0xff] %vm638, %v667
          %684 = vst.msk [vmem:[%s17 + $0x78] sm:$0xff] %vm638, %v668
        $region72: #{moco_forward.1} parent=67 // pred_fallthru
          _
        %v685 = vld [vmem:[%s543] sm:$0xff]
        %v686 = vld [vmem:[%s3] sm:$0xff]
        %v687 = vld [vmem:[%s3 + $0x8] sm:$0xff]
        %v688 = vld [vmem:[%s4] sm:$0x1]
        %v689 = vld [vmem:[%s5] sm:$0xff]
        %v690 = vld [vmem:[%s5 + $0x8] sm:$0xff]
        %v691 = vld [vmem:[%s5 + $0x10] sm:$0xff]
        %v692 = vld [vmem:[%s5 + $0x18] sm:$0xff]
        %v693 = vld [vmem:[%s5 + $0x20] sm:$0xff]
        %v694 = vld [vmem:[%s5 + $0x28] sm:$0xff]
        %v695 = vld [vmem:[%s5 + $0x30] sm:$0xff]
        %v696 = vld [vmem:[%s5 + $0x38] sm:$0xff]
        %v697 = vld [vmem:[%s5 + $0x40] sm:$0xff]
        %v698 = vld [vmem:[%s5 + $0x48] sm:$0xff]
        %v699 = vld [vmem:[%s5 + $0x50] sm:$0xff]
        %v700 = vld [vmem:[%s5 + $0x58] sm:$0xff]
        %v701 = vld [vmem:[%s6] sm:$0x1]
        %v702 = vpack.c.bf16 %v685, %v685
        %v703 = vpack.c.bf16 %v687, %v686
        %v705 = vlaneseq
        %v706 = vshrl.u32 %v705, 7
        %v707 = vsub.s32 0, %v706
        %v708 = vrot.slane %v688, %v707
        %vm710 = vcmask 130048
        %v712 = vsel %vm710, %v702, 0
        %714 = vmatprep.subr.bf16.mxu0 0
        %715 = vmatpush1.bf16.msra.mxu0 %v703
        %716 = vmatprep.subr.bf16.mxu0 0
        %717 = vmatpush1.bf16.msra.mxu0 0
        %718 = vmatprep.subr.bf16.mxu0 0
        %719 = vmatpush1.bf16.msra.mxu0 0
        %720 = vmatprep.subr.bf16.mxu0 0
        %721 = vmatpush1.bf16.msra.mxu0 0
        %722 = vmatprep.subr.bf16.mxu0 0
        %723 = vmatpush1.bf16.msra.mxu0 0
        %724 = vmatprep.subr.bf16.mxu0 0
        %725 = vmatpush1.bf16.msra.mxu0 0
        %726 = vmatprep.subr.bf16.mxu0 0
        %727 = vmatpush1.bf16.msra.mxu0 0
        %728 = vmatprep.subr.bf16.mxu0 0
        %729 = vmatpush1.bf16.msra.mxu0 0
        %730 = vmatprep.subr.bf16.mxu0 0
        %731 = vmatpush1.bf16.msra.mxu0 0
        %732 = vmatprep.subr.bf16.mxu0 0
        %733 = vmatpush1.bf16.msra.mxu0 0
        %734 = vmatprep.subr.bf16.mxu0 0
        %735 = vmatpush1.bf16.msra.mxu0 0
        %736 = vmatprep.subr.bf16.mxu0 0
        %737 = vmatpush1.bf16.msra.mxu0 0
        %738 = vmatprep.subr.bf16.mxu0 0
        %739 = vmatpush1.bf16.msra.mxu0 0
        %740 = vmatprep.subr.bf16.mxu0 0
        %741 = vmatpush1.bf16.msra.mxu0 0
        %742 = vmatprep.subr.bf16.mxu0 0
        %743 = vmatpush1.bf16.msra.mxu0 0
        %744 = vmatprep.subr.bf16.mxu0 0
        %745 = vmatpush1.bf16.msra.mxu0 0
        %746 = vmatprep.mubr.bf16.mxu0 0
        %747 = vmatmul.mubr.bf16.gmra.mrb[0].mxu0 %v712
        %v748 = vpop.f32.mrb[0].mxu0
        %v749 = vadd.f32 %v708, %v748
        %v750 = vpop.f32.mrb[0].mxu0
        %v751 = vpop.f32.mrb[0].mxu0
        %v752 = vpop.f32.mrb[0].mxu0
        %753 = vdwg.mxu0
        %v754 = vmax.f32 %v749, 0.0
        %v755 = vpack.c.bf16 %v754, %v754
        %v756 = vpack.c.bf16 %v690, %v689
        %v757 = vpack.c.bf16 %v692, %v691
        %v758 = vpack.c.bf16 %v694, %v693
        %v759 = vpack.c.bf16 %v696, %v695
        %v760 = vpack.c.bf16 %v698, %v697
        %v761 = vpack.c.bf16 %v700, %v699
        %v763 = vlaneseq
        %v764 = vshrl.u32 %v763, 7
        %v765 = vsub.s32 0, %v764
        %v766 = vrot.slane %v701, %v765
        %vm768 = vcmask 785408
        %v770 = vsel %vm768, %v755, 0
        %772 = vmatprep.subr.bf16.mxu0 0
        %773 = vmatpush1.bf16.msra.mxu0 %v756
        %774 = vmatprep.subr.bf16.mxu0 0
        %775 = vmatpush1.bf16.msra.mxu0 %v757
        %776 = vmatprep.subr.bf16.mxu0 0
        %777 = vmatpush1.bf16.msra.mxu0 %v758
        %778 = vmatprep.subr.bf16.mxu0 0
        %779 = vmatpush1.bf16.msra.mxu0 %v759
        %780 = vmatprep.subr.bf16.mxu0 0
        %781 = vmatpush1.bf16.msra.mxu0 %v760
        %782 = vmatprep.subr.bf16.mxu0 0
        %783 = vmatpush1.bf16.msra.mxu0 %v761
        %784 = vmatprep.subr.bf16.mxu0 0
        %785 = vmatpush1.bf16.msra.mxu0 0
        %786 = vmatprep.subr.bf16.mxu0 0
        %787 = vmatpush1.bf16.msra.mxu0 0
        %788 = vmatprep.subr.bf16.mxu0 0
        %789 = vmatpush1.bf16.msra.mxu0 0
        %790 = vmatprep.subr.bf16.mxu0 0
        %791 = vmatpush1.bf16.msra.mxu0 0
        %792 = vmatprep.subr.bf16.mxu0 0
        %793 = vmatpush1.bf16.msra.mxu0 0
        %794 = vmatprep.subr.bf16.mxu0 0
        %795 = vmatpush1.bf16.msra.mxu0 0
        %796 = vmatprep.subr.bf16.mxu0 0
        %797 = vmatpush1.bf16.msra.mxu0 0
        %798 = vmatprep.subr.bf16.mxu0 0
        %799 = vmatpush1.bf16.msra.mxu0 0
        %800 = vmatprep.subr.bf16.mxu0 0
        %801 = vmatpush1.bf16.msra.mxu0 0
        %802 = vmatprep.subr.bf16.mxu0 0
        %803 = vmatpush1.bf16.msra.mxu0 0
        %804 = vmatprep.mubr.bf16.mxu0 0
        %805 = vmatmul.mubr.bf16.gmra.mrb[0].mxu0 %v770
        %v806 = vpop.f32.mrb[0].mxu0
        %v807 = vadd.f32 %v766, %v806
        %v808 = vpop.f32.mrb[0].mxu0
        %v809 = vpop.f32.mrb[0].mxu0
        %v810 = vpop.f32.mrb[0].mxu0
        %811 = vdwg.mxu0
        %v812 = vmul.f32 %v807, %v807
        %vm813 = vcmask 261120
        %v814 = vsel %vm813, %v812, 0.0
        %815 = vadd.xlane.f32.xlu0 %v814
        %v816 = vpop.xlane.xlu0 %815
        %v817 = vmax.f32 %v816, 1e-24
        %v818 = vrsqrt.pop %v817
        %v819 = vmul.f32 %v807, %v818
        %v820 = vld [vmem:[%s547] sm:$0xff]
        %v821 = vpack.c.bf16 %v820, %v820
        %v822 = vpack.c.bf16 %v558, %v557
        %v824 = vlaneseq
        %v825 = vshrl.u32 %v824, 7
        %v826 = vsub.s32 0, %v825
        %v827 = vrot.slane %v563, %v826
        %v830 = vsel %vm710, %v821, 0
        %832 = vmatprep.subr.bf16.mxu0 0
        %833 = vmatpush1.bf16.msra.mxu0 %v822
        %834 = vmatprep.subr.bf16.mxu0 0
        %835 = vmatpush1.bf16.msra.mxu0 0
        %836 = vmatprep.subr.bf16.mxu0 0
        %837 = vmatpush1.bf16.msra.mxu0 0
        %838 = vmatprep.subr.bf16.mxu0 0
        %839 = vmatpush1.bf16.msra.mxu0 0
        %840 = vmatprep.subr.bf16.mxu0 0
        %841 = vmatpush1.bf16.msra.mxu0 0
        %842 = vmatprep.subr.bf16.mxu0 0
        %843 = vmatpush1.bf16.msra.mxu0 0
        %844 = vmatprep.subr.bf16.mxu0 0
        %845 = vmatpush1.bf16.msra.mxu0 0
        %846 = vmatprep.subr.bf16.mxu0 0
        %847 = vmatpush1.bf16.msra.mxu0 0
        %848 = vmatprep.subr.bf16.mxu0 0
        %849 = vmatpush1.bf16.msra.mxu0 0
        %850 = vmatprep.subr.bf16.mxu0 0
        %851 = vmatpush1.bf16.msra.mxu0 0
        %852 = vmatprep.subr.bf16.mxu0 0
        %853 = vmatpush1.bf16.msra.mxu0 0
        %854 = vmatprep.subr.bf16.mxu0 0
        %855 = vmatpush1.bf16.msra.mxu0 0
        %856 = vmatprep.subr.bf16.mxu0 0
        %857 = vmatpush1.bf16.msra.mxu0 0
        %858 = vmatprep.subr.bf16.mxu0 0
        %859 = vmatpush1.bf16.msra.mxu0 0
        %860 = vmatprep.subr.bf16.mxu0 0
        %861 = vmatpush1.bf16.msra.mxu0 0
        %862 = vmatprep.subr.bf16.mxu0 0
        %863 = vmatpush1.bf16.msra.mxu0 0
        %864 = vmatprep.mubr.bf16.mxu0 0
        %865 = vmatmul.mubr.bf16.gmra.mrb[0].mxu0 %v830
        %v866 = vpop.f32.mrb[0].mxu0
        %v867 = vadd.f32 %v827, %v866
        %v868 = vpop.f32.mrb[0].mxu0
        %v869 = vpop.f32.mrb[0].mxu0
        %v870 = vpop.f32.mrb[0].mxu0
        %871 = vdwg.mxu0
        %v872 = vmax.f32 %v867, 0.0
        %v873 = vpack.c.bf16 %v872, %v872
        %v874 = vpack.c.bf16 %v613, %v612
        %v875 = vpack.c.bf16 %v615, %v614
        %v876 = vpack.c.bf16 %v617, %v616
        %v877 = vpack.c.bf16 %v619, %v618
        %v878 = vpack.c.bf16 %v621, %v620
        %v879 = vpack.c.bf16 %v623, %v622
        %v881 = vlaneseq
        %v882 = vshrl.u32 %v881, 7
        %v883 = vsub.s32 0, %v882
        %v884 = vrot.slane %v628, %v883
        %v887 = vsel %vm768, %v873, 0
        %889 = vmatprep.subr.bf16.mxu0 0
        %890 = vmatpush1.bf16.msra.mxu0 %v874
        %891 = vmatprep.subr.bf16.mxu0 0
        %892 = vmatpush1.bf16.msra.mxu0 %v875
        %893 = vmatprep.subr.bf16.mxu0 0
        %894 = vmatpush1.bf16.msra.mxu0 %v876
        %895 = vmatprep.subr.bf16.mxu0 0
        %896 = vmatpush1.bf16.msra.mxu0 %v877
        %897 = vmatprep.subr.bf16.mxu0 0
        %898 = vmatpush1.bf16.msra.mxu0 %v878
        %899 = vmatprep.subr.bf16.mxu0 0
        %900 = vmatpush1.bf16.msra.mxu0 %v879
        %901 = vmatprep.subr.bf16.mxu0 0
        %902 = vmatpush1.bf16.msra.mxu0 0
        %903 = vmatprep.subr.bf16.mxu0 0
        %904 = vmatpush1.bf16.msra.mxu0 0
        %905 = vmatprep.subr.bf16.mxu0 0
        %906 = vmatpush1.bf16.msra.mxu0 0
        %907 = vmatprep.subr.bf16.mxu0 0
        %908 = vmatpush1.bf16.msra.mxu0 0
        %909 = vmatprep.subr.bf16.mxu0 0
        %910 = vmatpush1.bf16.msra.mxu0 0
        %911 = vmatprep.subr.bf16.mxu0 0
        %912 = vmatpush1.bf16.msra.mxu0 0
        %913 = vmatprep.subr.bf16.mxu0 0
        %914 = vmatpush1.bf16.msra.mxu0 0
        %915 = vmatprep.subr.bf16.mxu0 0
        %916 = vmatpush1.bf16.msra.mxu0 0
        %917 = vmatprep.subr.bf16.mxu0 0
        %918 = vmatpush1.bf16.msra.mxu0 0
        %919 = vmatprep.subr.bf16.mxu0 0
        %920 = vmatpush1.bf16.msra.mxu0 0
        %921 = vmatprep.mubr.bf16.mxu0 0
        %922 = vmatmul.mubr.bf16.gmra.mrb[0].mxu0 %v887
        %v923 = vpop.f32.mrb[0].mxu0
        %v924 = vadd.f32 %v884, %v923
        %v925 = vpop.f32.mrb[0].mxu0
        %v926 = vpop.f32.mrb[0].mxu0
        %v927 = vpop.f32.mrb[0].mxu0
        %928 = vdwg.mxu0
        %v929 = vmul.f32 %v924, %v924
        %v930 = vsel %vm813, %v929, 0.0
        %931 = vadd.xlane.f32.xlu0 %v930
        %v932 = vpop.xlane.xlu0 %931
        %v933 = vmax.f32 %v932, 1e-24
        %v934 = vrsqrt.pop %v933
        %v935 = vmul.f32 %v924, %v934
        %v936 = vmul.f32 %v819, 10.0
        %v937 = vmul.f32 %v936, %v935
        %v938 = vsel %vm813, %v937, 0.0
        %939 = vadd.xlane.f32.xlu0 %v938
        %v940 = vpop.xlane.xlu0 %939
        %v941 = vpack.c.bf16 %v936, %v936
        %v942 = vld [vmem:[%s11] sm:$0xff]
        %v943 = vld [vmem:[%s11 + $0x8] sm:$0xff]
        %v944 = vld [vmem:[%s11 + $0x10] sm:$0xff]
        %v945 = vld [vmem:[%s11 + $0x18] sm:$0xff]
        %v946 = vld [vmem:[%s11 + $0x20] sm:$0xff]
        %v947 = vld [vmem:[%s11 + $0x28] sm:$0xff]
        %v948 = vld [vmem:[%s11 + $0x30] sm:$0xff]
        %v949 = vld [vmem:[%s11 + $0x38] sm:$0xff]
        %v950 = vld [vmem:[%s11 + $0x40] sm:$0xff]
        %v951 = vld [vmem:[%s11 + $0x48] sm:$0xff]
        %v952 = vld [vmem:[%s11 + $0x50] sm:$0xff]
        %v953 = vld [vmem:[%s11 + $0x58] sm:$0xff]
        %v954 = vld [vmem:[%s11 + $0x60] sm:$0xff]
        %v955 = vld [vmem:[%s11 + $0x68] sm:$0xff]
        %v956 = vld [vmem:[%s11 + $0x70] sm:$0xff]
        %v957 = vld [vmem:[%s11 + $0x78] sm:$0xff]
        %v958 = vpack.c.bf16 %v943, %v942
        %v959 = vpack.c.bf16 %v945, %v944
        %v960 = vpack.c.bf16 %v947, %v946
        %v961 = vpack.c.bf16 %v949, %v948
        %v962 = vpack.c.bf16 %v951, %v950
        %v963 = vpack.c.bf16 %v953, %v952
        %v964 = vpack.c.bf16 %v955, %v954
        %v965 = vpack.c.bf16 %v957, %v956
        %v967 = vsel %vm813, %v941, 0
        %v970 = vsel %vm813, %v958, 0
        %v973 = vsel %vm813, %v959, 0
        %v976 = vsel %vm813, %v960, 0
        %v979 = vsel %vm813, %v961, 0
        %v982 = vsel %vm813, %v962, 0
        %v985 = vsel %vm813, %v963, 0
        %v988 = vsel %vm813, %v964, 0
        %v991 = vsel %vm813, %v965, 0
        %993 = vmatprep.subr.bf16.mxu0 0
        %994 = vmatpush1.bf16.xpose.msra.mxu0 %v970
        %995 = vmatprep.subr.bf16.mxu0 0
        %996 = vmatpush1.bf16.xpose.msra.mxu0 %v973
        %997 = vmatprep.subr.bf16.mxu0 0
        %998 = vmatpush1.bf16.xpose.msra.mxu0 %v976
        %999 = vmatprep.subr.bf16.mxu0 0
        %1000 = vmatpush1.bf16.xpose.msra.mxu0 %v979
        %1001 = vmatprep.subr.bf16.mxu0 0
        %1002 = vmatpush1.bf16.xpose.msra.mxu0 %v982
        %1003 = vmatprep.subr.bf16.mxu0 0
        %1004 = vmatpush1.bf16.xpose.msra.mxu0 %v985
        %1005 = vmatprep.subr.bf16.mxu0 0
        %1006 = vmatpush1.bf16.xpose.msra.mxu0 %v988
        %1007 = vmatprep.subr.bf16.mxu0 0
        %1008 = vmatpush1.bf16.xpose.msra.mxu0 %v991
        %1009 = vmatprep.subr.bf16.mxu0 0
        %1010 = vmatpush1.bf16.xpose.msra.mxu0 0
        %1011 = vmatprep.subr.bf16.mxu0 0
        %1012 = vmatpush1.bf16.xpose.msra.mxu0 0
        %1013 = vmatprep.subr.bf16.mxu0 0
        %1014 = vmatpush1.bf16.xpose.msra.mxu0 0
        %1015 = vmatprep.subr.bf16.mxu0 0
        %1016 = vmatpush1.bf16.xpose.msra.mxu0 0
        %1017 = vmatprep.subr.bf16.mxu0 0
        %1018 = vmatpush1.bf16.xpose.msra.mxu0 0
        %1019 = vmatprep.subr.bf16.mxu0 0
        %1020 = vmatpush1.bf16.xpose.msra.mxu0 0
        %1021 = vmatprep.subr.bf16.mxu0 0
        %1022 = vmatpush1.bf16.xpose.msra.mxu0 0
        %1023 = vmatprep.subr.bf16.mxu0 0
        %1024 = vmatpush1.bf16.xpose.msra.mxu0 0
        %1025 = vmatprep.mubr.bf16.mxu0 0
        %1026 = vmatmul.mubr.bf16.gmra.mrb[0].mxu0 %v967
        %v1027 = vpop.f32.mrb[0].mxu0
        %v1028 = vadd.f32 0.0, %v1027
        %v1029 = vpop.f32.mrb[0].mxu0
        %v1030 = vpop.f32.mrb[0].mxu0
        %v1031 = vpop.f32.mrb[0].mxu0
        %1032 = vdwg.mxu0
        %1034 = vrot.lane.b32.xlu0 %v1028, 1
        %v1035 = vpop.permute.xlu0 %1034
        %vm1037 = vcmask 7168
        %v1038 = vsel %vm1037, %v940, %v1035
        %1039 = vst [vmem:[%s529] sm:$0xff] %v1038
        %1040 = vst.msk [vmem:[%s529 + $0x8] sm:$0xff] %vm1037, %v1035
        %s1041 = sld [smem:[#allocation3]]
        %s1042 = smul.u32 %s33, 8
        %s1043 = sadd.s32 %s1041, %s1042
        %s1044 = sadd.s32 %s1043, 8
        %p1045 = scmp.le.s32.totalorder %s1044, 128
        // Predicated region
        $region73: #{moco_forward.1} parent=67 // pred_check
          %p1046 = pneg %p1045
        $region74: #{moco_forward.1} parent=67 // pred_check_branch
          %1048 = sbr.rel (%p1046) target = $region76
        $region75: #{moco_forward.1} parent=67 // pred_region
          %s1049 = scalar_lea.vmem %s17, %s1043
          %1050 = vst.msk [vmem:[%s1049] sm:$0xff] %vm813, %v935
        $region76: #{moco_forward.1} parent=67 // pred_fallthru
          _
        %p1051 = scmp.gt.s32.totalorder %s1044, 128
        // Predicated region
        $region77: #{moco_forward.1} parent=67 // pred_check
          %p1052 = pneg %p1051
        $region78: #{moco_forward.1} parent=67 // pred_check_branch
          %1054 = sbr.rel (%p1052) target = $region80
        $region79: #{moco_forward.1} parent=67 // pred_region
          %1055 = vst.msk [vmem:[#allocation2] sm:$0xff] %vm813, %v935
          loop: start=0, step=1, limit=8
          $region81: #{moco_forward.1} parent=79 // loop_pre_header
            _
          $region82: #{moco_forward.1} parent=79 // loop_header
            %s1057 = sphi 0, %s1061
            %p1058 = scmp.ge.s32.totalorder %s1057, 8
          $region83: #{moco_forward.1} parent=79 // loop_header_branch
            %1060 = sbr.rel (%p1058) target = $region87
          $region84: #{moco_forward.1} parent=79 // loop_body
            %s1062 = sadd.s32 %s1043, %s1057
            %p1063 = scmp.lt.s32.totalorder %s1062, 0
            %s1064 = ssub.s32 0, %s1062
            %s1065 = scalar_select %p1063, %s1064, %s1062
            %s1066 = sand.u32 %s1065, 127
            %s1067 = ssub.s32 0, %s1066
            %s1068 = scalar_select %p1063, %s1067, %s1066
            %s1069 = scalar_lea.vmem [#allocation2], %s1057
            %v1070 = vld [vmem:[%s1069] sm:$0x1]
            %s1071 = scalar_lea.vmem %s17, %s1068
            %vm1072 = vcmask 253952
            %1073 = vst.msk [vmem:[%s1071] sm:$0x1] %vm1072, %v1070
          $region85: #{moco_forward.1} parent=79 // loop_footer
            %s1061 = sadd.s32 1, %s1057
          $region86: #{moco_forward.1} parent=79 // loop_footer_branch
            %1056 = sbr.rel target = $region82
          $region87: #{moco_forward.1} parent=79 // loop_exit
            _
        $region80: #{moco_forward.1} parent=67 // pred_fallthru
          _
        %s1074 = sand.u32 %s303, 1
        %s1075 = scalar_lea.sflag [#allocation5], %s1074
        %s1076 = sand.u32 %s303, 1
        %s1077 = smul.addr %s1076, 16
        %s1078 = scalar_lea.vmem [#allocation4], %s1077
        // Predicated region
        $region88: #{moco_forward.1} parent=67 // pred_check
          %p1079 = pneg %p313
        $region89: #{moco_forward.1} parent=67 // pred_check_branch
          %1081 = sbr.rel (%p1079) target = $region91
        $region90: #{moco_forward.1} parent=67 // pred_region
          %s1083 = ssub.s32 256, 256
          %1084 = vsyncadd %s1075, %s1083
          %s1085 = smul.addr %s33, 2
          %s1086 = smul.addr %s1085, 128
          %s1087 = scalar_lea.hbm %s12, %s1086
          %s1089 = sshll.u32 %s1078, 4
          %s1090 = int_to_ptr.vmem [resolvable:$true] %s1089
          %1092 = dma.vmem_to_hbm [thread:$0]  %s1090, 256, %s1087, %s1075
        $region91: #{moco_forward.1} parent=67 // pred_fallthru
          _
        // Predicated region
        $region92: #{moco_forward.1} parent=67 // pred_check
          %p1093 = pneg %p334
        $region93: #{moco_forward.1} parent=67 // pred_check_branch
          %1095 = sbr.rel (%p1093) target = $region95
        $region94: #{moco_forward.1} parent=67 // pred_region
          _
        $region95: #{moco_forward.1} parent=67 // pred_fallthru
          _
        // Predicated region
        $region96: #{moco_forward.1} parent=67 // pred_check
          %p1096 = pneg %p355
        $region97: #{moco_forward.1} parent=67 // pred_check_branch
          %1098 = sbr.rel (%p1096) target = $region99
        $region98: #{moco_forward.1} parent=67 // pred_region
          _
        $region99: #{moco_forward.1} parent=67 // pred_fallthru
          _
        // Predicated region
        $region100: #{moco_forward.1} parent=67 // pred_check
          %p1099 = pneg %p376
        $region101: #{moco_forward.1} parent=67 // pred_check_branch
          %1101 = sbr.rel (%p1099) target = $region103
        $region102: #{moco_forward.1} parent=67 // pred_region
          _
        $region103: #{moco_forward.1} parent=67 // pred_fallthru
          _
        // Predicated region
        $region104: #{moco_forward.1} parent=67 // pred_check
          %p1102 = pneg %p397
        $region105: #{moco_forward.1} parent=67 // pred_check_branch
          %1104 = sbr.rel (%p1102) target = $region107
        $region106: #{moco_forward.1} parent=67 // pred_region
          _
        $region107: #{moco_forward.1} parent=67 // pred_fallthru
          _
        // Predicated region
        $region108: #{moco_forward.1} parent=67 // pred_check
          %p1105 = pneg %p418
        $region109: #{moco_forward.1} parent=67 // pred_check_branch
          %1107 = sbr.rel (%p1105) target = $region111
        $region110: #{moco_forward.1} parent=67 // pred_region
          _
        $region111: #{moco_forward.1} parent=67 // pred_fallthru
          _
        // Predicated region
        $region112: #{moco_forward.1} parent=67 // pred_check
          %p1108 = pneg %p334
        $region113: #{moco_forward.1} parent=67 // pred_check_branch
          %1110 = sbr.rel (%p1108) target = $region115
        $region114: #{moco_forward.1} parent=67 // pred_region
          _
        $region115: #{moco_forward.1} parent=67 // pred_fallthru
          _
        // Predicated region
        $region116: #{moco_forward.1} parent=67 // pred_check
          %p1111 = pneg %p355
        $region117: #{moco_forward.1} parent=67 // pred_check_branch
          %1113 = sbr.rel (%p1111) target = $region119
        $region118: #{moco_forward.1} parent=67 // pred_region
          _
        $region119: #{moco_forward.1} parent=67 // pred_fallthru
          _
        // Predicated region
        $region120: #{moco_forward.1} parent=67 // pred_check
          %p1114 = pneg %p376
        $region121: #{moco_forward.1} parent=67 // pred_check_branch
          %1116 = sbr.rel (%p1114) target = $region123
        $region122: #{moco_forward.1} parent=67 // pred_region
          _
        $region123: #{moco_forward.1} parent=67 // pred_fallthru
          _
        // Predicated region
        $region124: #{moco_forward.1} parent=67 // pred_check
          %p1117 = pneg %p397
        $region125: #{moco_forward.1} parent=67 // pred_check_branch
          %1119 = sbr.rel (%p1117) target = $region127
        $region126: #{moco_forward.1} parent=67 // pred_region
          _
        $region127: #{moco_forward.1} parent=67 // pred_fallthru
          _
        // Predicated region
        $region128: #{moco_forward.1} parent=67 // pred_check
          %p1120 = pneg %p418
        $region129: #{moco_forward.1} parent=67 // pred_check_branch
          %1122 = sbr.rel (%p1120) target = $region131
        $region130: #{moco_forward.1} parent=67 // pred_region
          _
        $region131: #{moco_forward.1} parent=67 // pred_fallthru
          _
      $region68: #{moco_forward.1} parent=5 // pred_fallthru
        _
      %p1123 = scmp.le.s32.totalorder 2, %s28
      // Predicated region
      $region132: #{moco_forward.1} parent=5 // pred_check
        %p1124 = pneg %p1123
      $region133: #{moco_forward.1} parent=5 // pred_check_branch
        %1126 = sbr.rel (%p1124) target = $region135
      $region134: #{moco_forward.1} parent=5 // pred_region
        %s1127 = ssub.s32 %s28, 2
        // Predicated region
        $region136: #{moco_forward.1} parent=134 // pred_check
          %p1128 = pneg %p319
        $region137: #{moco_forward.1} parent=134 // pred_check_branch
          %1130 = sbr.rel (%p1128) target = $region139
        $region138: #{moco_forward.1} parent=134 // pred_region
          %s1131 = sand.u32 %s304, 1
          %s1132 = scalar_lea.sflag [#allocation5], %s1131
          %s1133 = sand.u32 %s304, 1
          %s1134 = smul.addr %s1133, 16
          %s1135 = scalar_lea.vmem [#allocation4], %s1134
          %1136 = dma.done %s1132, 256
        $region139: #{moco_forward.1} parent=134 // pred_fallthru
          _
      $region135: #{moco_forward.1} parent=5 // pred_fallthru
        _
    $region6: #{moco_forward.1} parent=1 // loop_footer
      %s32 = sadd.s32 1, %s28
    $region7: #{moco_forward.1} parent=1 // loop_footer_branch
      %27 = sbr.rel target = $region3
    $region8: #{moco_forward.1} parent=1 // loop_exit
      _
    %1137 = vsyncpa [#allocation5], 1
    %s1138 = scalar_lea.sflag [#allocation5], 1
    %1139 = vsyncpa %s1138, 1

</llo_original>
